<compile_context>
chip_gen: v5e
topology: v5e:2x2
jax: 0.10.0
libtpu: 0.0.40
codegen_flags: <defaults>
</compile_context>

<pallas_src>
import jax
import jax.numpy as jnp
from jax import lax
from jax.experimental import pallas as pl
from jax.experimental.pallas import tpu as pltpu


def _make_divisible(ch, divisor=8, min_ch=None):
    if min_ch is None:
        min_ch = divisor
    new_ch = max(min_ch, int(ch + divisor / 2) // divisor * divisor)
    if new_ch < 0.9 * ch:
        new_ch += divisor
    return new_ch


def _fold_bn(w2d, gamma, beta, mean, var, eps=1e-5):
    """Fold eval-mode BatchNorm into the preceding bias-free conv.

    w2d: (C_out, fan_in) conv weight flattened over (in, kh, kw).
    Returns folded (weight, bias).
    """
    s = gamma / jnp.sqrt(var + eps)
    return w2d * s[:, None], beta - mean * s


def _hardswish(v):
    return v * jnp.clip(v + 3.0, 0.0, 6.0) * (1.0 / 6.0)


def _relu(v):
    return jnp.maximum(v, 0.0)


def inverted_residual_forward(x, params, *, kernel, stride, use_se, use_hs):
    """Fused Pallas forward of a MobileNetV3 InvertedResidual block (NCHW)."""
    if stride != 1:
        # TODO(synk): stride=2 depthwise not implemented in the Pallas kernel.
        raise NotImplementedError("stride must be 1 in this Pallas kernel")

    B, C_in, H, W = x.shape
    HW = H * W
    assert HW % 128 == 0, "pad H*W to a multiple of 128 for lane-dense stores"

    K = kernel
    p = (K - 1) // 2

    has_expand = params["w_exp"] is not None
    if has_expand:
        C_exp = params["w_exp"].shape[0]
        w_exp_f, b_exp_f = _fold_bn(
            params["w_exp"].reshape(C_exp, C_in).astype(jnp.float32),
            *params["bn_exp"])
    else:
        C_exp = C_in
        w_exp_f = jnp.zeros((1, 1), jnp.float32)          # unused placeholder
        b_exp_f = jnp.zeros((C_exp,), jnp.float32)

    w_dw_f, b_dw_f = _fold_bn(
        params["w_dw"].reshape(C_exp, K * K).astype(jnp.float32),
        *params["bn_dw"])

    C_out = params["w_proj"].shape[0]
    w_proj_f, b_proj_f = _fold_bn(
        params["w_proj"].reshape(C_out, C_exp).astype(jnp.float32),
        *params["bn_proj"])

    if use_se:
        C_sq = params["se_w1"].shape[0]
        w_se1t = params["se_w1"].astype(jnp.float32).T        # (C_exp, C_sq)
        w_se2 = params["se_w2"].astype(jnp.float32)           # (C_exp, C_sq)
        b_se1 = params["se_b1"].astype(jnp.float32).reshape(1, C_sq)
        b_se2 = params["se_b2"].astype(jnp.float32)
    else:
        w_se1t = jnp.zeros((1, 1), jnp.float32)
        w_se2 = jnp.zeros((1, 1), jnp.float32)
        b_se1 = jnp.zeros((1, 1), jnp.float32)
        b_se2 = jnp.zeros((C_exp,), jnp.float32)

    use_res = (stride == 1) and (C_in == C_out)

    # Pack every column-oriented per-channel bias into ONE lane-packed block
    # (avoids lane-width-1 (C,1) VMEM tiles and extra per-step DMAs).
    R = max(C_exp, C_out)
    cpack = jnp.zeros((R, 4), jnp.float32)
    cpack = cpack.at[:C_exp, 0].set(b_exp_f)
    cpack = cpack.at[:C_exp, 1].set(b_dw_f)
    cpack = cpack.at[:C_exp, 2].set(b_se2)
    cpack = cpack.at[:C_out, 3].set(b_proj_f)

    # Precomputed 'same'-padding validity masks for the K*K shifted depthwise
    # taps (keeps integer div/mod off the in-kernel lane index).
    hh = jnp.arange(H, dtype=jnp.int32).reshape(H, 1)
    ww = jnp.arange(W, dtype=jnp.int32).reshape(1, W)
    rows = []
    for dh in range(-p, p + 1):
        for dw in range(-p, p + 1):
            valid = ((hh + dh >= 0) & (hh + dh < H) &
                     (ww + dw >= 0) & (ww + dw < W))
            rows.append(valid.reshape(HW))
    dw_mask = jnp.stack(rows, axis=0).astype(jnp.float32)      # (K*K, HW)

    x2 = x.reshape(B, C_in, HW)
    act = _hardswish if use_hs else _relu

    def kernel_fn(x_ref, w_exp_ref, w_dw_ref, w_se1t_ref, w_se2_ref,
                  w_proj_ref, b_se1_ref, cpack_ref, mask_ref, o_ref):
        xb = x_ref[...].astype(jnp.float32)                    # (C_in, HW)
        cp = cpack_ref[...]                                    # (R, 4)

        # ---- expand 1x1 conv + folded BN + activation (MXU, lane-dense N=HW)
        if has_expand:
            y = jnp.dot(w_exp_ref[...], xb,
                        preferred_element_type=jnp.float32)
            y = act(y + cp[:C_exp, 0:1])
        else:
            y = xb

        # ---- depthwise KxK conv (stride 1, 'same'), folded BN + activation.
        # K*K lane-shifted multiply-adds with precomputed boundary masks.
        wdw = w_dw_ref[...]                                    # (C_exp, K*K)
        msk = mask_ref[...]                                    # (K*K, HW)
        acc = jnp.zeros_like(y)
        t = 0
        for dh in range(-p, p + 1):
            for dw in range(-p, p + 1):
                s = (dh * W + dw) % HW
                if s == 0:
                    shifted = y
                else:
                    # shifted[:, j] = y[:, (j + s) % HW]
                    shifted = jnp.concatenate([y[:, s:], y[:, :s]], axis=1)
                acc = acc + (shifted * msk[t:t + 1, :]) * wdw[:, t:t + 1]
                t += 1
        y = act(acc + cp[:C_exp, 1:2])

        # ---- squeeze-and-excitation: VPU/XLU only (no N=1 MXU matmuls).
        if use_se:
            pooled = jnp.mean(y, axis=1, keepdims=True)        # (C_exp, 1)
            h = jnp.sum(w_se1t_ref[...] * pooled, axis=0, keepdims=True)
            h = jnp.maximum(h + b_se1_ref[...], 0.0)           # (1, C_sq)
            s_col = jnp.sum(w_se2_ref[...] * h, axis=1, keepdims=True)
            s_col = s_col + cp[:C_exp, 2:3]                    # (C_exp, 1)
            scale = jnp.clip(s_col * (1.0 / 6.0) + 0.5, 0.0, 1.0)
            y = y * scale

        # ---- project 1x1 conv + folded BN (identity activation).
        out = jnp.dot(w_proj_ref[...], y, preferred_element_type=jnp.float32)
        out = out + cp[:C_out, 3:4]                            # (C_out, HW)

        if use_res:
            out = out + xb
        o_ref[...] = out.astype(o_ref.dtype)

    # Advisory cost estimate for XLA's scheduler.
    flops = 2 * B * HW * (K * K * C_exp + C_exp * C_out)
    if has_expand:
        flops += 2 * B * HW * C_in * C_exp
    if use_se:
        flops += 4 * B * C_exp * w_se2.shape[1]
    param_bytes = sum(int(a.size) * 4 for a in
                      (w_exp_f, w_dw_f, w_se1t, w_se2, w_proj_f, b_se1,
                       cpack, dw_mask))
    itemsize = jnp.dtype(x.dtype).itemsize
    bytes_accessed = (B * C_in * HW + B * C_out * HW) * itemsize + param_bytes

    out = pl.pallas_call(
        kernel_fn,
        out_shape=jax.ShapeDtypeStruct((B, C_out, HW), x.dtype),
        grid=(B,),
        in_specs=[
            pl.BlockSpec((None, C_in, HW), lambda b: (b, 0, 0)),   # x (per batch)
            pl.BlockSpec(w_exp_f.shape, lambda b: (0, 0)),
            pl.BlockSpec(w_dw_f.shape, lambda b: (0, 0)),
            pl.BlockSpec(w_se1t.shape, lambda b: (0, 0)),
            pl.BlockSpec(w_se2.shape, lambda b: (0, 0)),
            pl.BlockSpec(w_proj_f.shape, lambda b: (0, 0)),
            pl.BlockSpec(b_se1.shape, lambda b: (0, 0)),
            pl.BlockSpec(cpack.shape, lambda b: (0, 0)),
            pl.BlockSpec(dw_mask.shape, lambda b: (0, 0)),
        ],
        out_specs=pl.BlockSpec((None, C_out, HW), lambda b: (b, 0, 0)),
        compiler_params=pltpu.CompilerParams(
            dimension_semantics=("parallel",),
            vmem_limit_bytes=32 * 1024 * 1024),
        cost_estimate=pl.CostEstimate(
            flops=int(flops), transcendentals=0,
            bytes_accessed=int(bytes_accessed)),
    )(x2, w_exp_f, w_dw_f, w_se1t, w_se2, w_proj_f, b_se1, cpack, dw_mask)
    return out.reshape(B, C_out, H, W)


def inverted_residual_reference(x, params, *, kernel, stride, use_se, use_hs,
                                eps=1e-5):
    """Pure-JAX (unfused) reference of the intended InvertedResidual forward."""
    precision = lax.Precision.HIGHEST

    def bn(y, gamma, beta, mean, var):
        inv = gamma / jnp.sqrt(var + eps)
        return ((y - mean[None, :, None, None]) * inv[None, :, None, None]
                + beta[None, :, None, None])

    def act(v):
        return _hardswish(v) if use_hs else _relu(v)

    y = x
    if params["w_exp"] is not None:
        y = lax.conv_general_dilated(
            y, params["w_exp"], (1, 1), "VALID",
            dimension_numbers=("NCHW", "OIHW", "NCHW"), precision=precision)
        y = act(bn(y, *params["bn_exp"]))

    C_exp = y.shape[1]
    pad = (kernel - 1) // 2
    y = lax.conv_general_dilated(
        y, params["w_dw"], (stride, stride), [(pad, pad), (pad, pad)],
        dimension_numbers=("NCHW", "OIHW", "NCHW"),
        feature_group_count=C_exp, precision=precision)
    y = act(bn(y, *params["bn_dw"]))

    if use_se:
        pooled = jnp.mean(y, axis=(2, 3), keepdims=True)
        h = (jnp.einsum("oc,bcij->boij", params["se_w1"], pooled,
                        precision=precision)
             + params["se_b1"][None, :, None, None])
        h = jnp.maximum(h, 0.0)
        s = (jnp.einsum("oc,bcij->boij", params["se_w2"], h,
                        precision=precision)
             + params["se_b2"][None, :, None, None])
        y = y * jnp.clip(s / 6.0 + 0.5, 0.0, 1.0)

    y = lax.conv_general_dilated(
        y, params["w_proj"], (1, 1), "VALID",
        dimension_numbers=("NCHW", "OIHW", "NCHW"), precision=precision)
    y = bn(y, *params["bn_proj"])

    if stride == 1 and x.shape[1] == y.shape[1]:
        y = y + x
    return y


if __name__ == "__main__":
    # InvertedResidualConfig(input_c=16, kernel=3, expanded_c=64, out_c=16,
    #                        use_se=True, activation='HS', stride=1, width=1.0)
    C_in, K, C_exp, C_out = 16, 3, 64, 16
    use_se, use_hs, stride = True, True, 1
    C_sq = _make_divisible(C_exp // 4, 8)   # SE squeeze channels (ratio = 4)
    B, H, W = 2, 16, 16

    key = jax.random.PRNGKey(0)
    ks = jax.random.split(key, 16)

    def bn_params(k, c):
        k1, k2, k3, k4 = jax.random.split(k, 4)
        gamma = 1.0 + 0.1 * jax.random.normal(k1, (c,), jnp.float32)
        beta = 0.1 * jax.random.normal(k2, (c,), jnp.float32)
        mean = 0.1 * jax.random.normal(k3, (c,), jnp.float32)
        var = jax.random.uniform(k4, (c,), jnp.float32, 0.5, 1.5)
        return (gamma, beta, mean, var)

    x = jax.random.normal(ks[0], (B, C_in, H, W), jnp.float32)
    params = {
        "w_exp": 0.2 * jax.random.normal(ks[1], (C_exp, C_in, 1, 1), jnp.float32),
        "bn_exp": bn_params(ks[2], C_exp),
        "w_dw": 0.2 * jax.random.normal(ks[3], (C_exp, 1, K, K), jnp.float32),
        "bn_dw": bn_params(ks[4], C_exp),
        "se_w1": 0.2 * jax.random.normal(ks[5], (C_sq, C_exp), jnp.float32),
        "se_b1": 0.1 * jax.random.normal(ks[6], (C_sq,), jnp.float32),
        "se_w2": 0.2 * jax.random.normal(ks[7], (C_exp, C_sq), jnp.float32),
        "se_b2": 0.1 * jax.random.normal(ks[8], (C_exp,), jnp.float32),
        "w_proj": 0.2 * jax.random.normal(ks[9], (C_out, C_exp, 1, 1), jnp.float32),
        "bn_proj": bn_params(ks[10], C_out),
    }

    out = jax.block_until_ready(
        inverted_residual_forward(x, params, kernel=K, stride=stride,
                                  use_se=use_se, use_hs=use_hs))
    ref = jax.block_until_ready(
        inverted_residual_reference(x, params, kernel=K, stride=stride,
                                    use_se=use_se, use_hs=use_hs))

    assert out.shape == (B, C_out, H, W) and out.dtype == x.dtype
    err = float(jnp.max(jnp.abs(out - ref)))
    # Tolerance covers default-precision MXU f32 matmuls in the kernel vs the
    # HIGHEST-precision reference; structural bugs produce O(1) errors.
    assert err < 2e-2, f"mismatch vs reference (max abs err {err})"
    print("KERNEL_OK")
</pallas_src>

<mosaic_0001>
module attributes {stable_mosaic.version = 11 : i64} {
  func.func @kernel_fn(%arg0: i32, %arg1: memref<1x16x256xf32, #tpu.memory_space<vmem>>, %arg2: memref<64x16xf32, #tpu.memory_space<vmem>>, %arg3: memref<64x9xf32, #tpu.memory_space<vmem>>, %arg4: memref<64x16xf32, #tpu.memory_space<vmem>>, %arg5: memref<64x16xf32, #tpu.memory_space<vmem>>, %arg6: memref<16x64xf32, #tpu.memory_space<vmem>>, %arg7: memref<1x16xf32, #tpu.memory_space<vmem>>, %arg8: memref<64x4xf32, #tpu.memory_space<vmem>>, %arg9: memref<9x256xf32, #tpu.memory_space<vmem>>, %arg10: memref<1x16x256xf32, #tpu.memory_space<vmem>>) attributes {dimension_semantics = [#tpu.dimension_semantics<parallel>], iteration_bounds = array<i64: 2>, scalar_prefetch = 0 : i64, scratch_operands = 0 : i64, tpu.core_type = #tpu.core_type<tc>, window_params = [{transform_indices = @transform_0, window_bounds = array<i64: 1, 16, 256>}, {pipeline_mode = #tpu.pipeline_mode<synchronous>, transform_indices = @transform_1, window_bounds = array<i64: 64, 16>}, {pipeline_mode = #tpu.pipeline_mode<synchronous>, transform_indices = @transform_2, window_bounds = array<i64: 64, 9>}, {pipeline_mode = #tpu.pipeline_mode<synchronous>, transform_indices = @transform_3, window_bounds = array<i64: 64, 16>}, {pipeline_mode = #tpu.pipeline_mode<synchronous>, transform_indices = @transform_4, window_bounds = array<i64: 64, 16>}, {pipeline_mode = #tpu.pipeline_mode<synchronous>, transform_indices = @transform_5, window_bounds = array<i64: 16, 64>}, {pipeline_mode = #tpu.pipeline_mode<synchronous>, transform_indices = @transform_6, window_bounds = array<i64: 1, 16>}, {pipeline_mode = #tpu.pipeline_mode<synchronous>, transform_indices = @transform_7, window_bounds = array<i64: 64, 4>}, {pipeline_mode = #tpu.pipeline_mode<synchronous>, transform_indices = @transform_8, window_bounds = array<i64: 9, 256>}, {transform_indices = @transform_9, window_bounds = array<i64: 1, 16, 256>}]} {
    %c0 = arith.constant 0 : index
    %c0_0 = arith.constant 0 : index
    %c0_1 = arith.constant 0 : index
    %0 = vector.load %arg1[%c0, %c0_0, %c0_1] : memref<1x16x256xf32, #tpu.memory_space<vmem>>, vector<1x16x256xf32>
    %1 = vector.shape_cast %0 : vector<1x16x256xf32> to vector<16x256xf32>
    %c0_2 = arith.constant 0 : index
    %c0_3 = arith.constant 0 : index
    %2 = vector.load %arg8[%c0_2, %c0_3] : memref<64x4xf32, #tpu.memory_space<vmem>>, vector<64x4xf32>
    %c0_4 = arith.constant 0 : index
    %c0_5 = arith.constant 0 : index
    %3 = vector.load %arg2[%c0_4, %c0_5] : memref<64x16xf32, #tpu.memory_space<vmem>>, vector<64x16xf32>
    %cst = arith.constant dense<0.000000e+00> : vector<64x256xf32>
    %4 = tpu.matmul %3, %1, %cst {dimension_numbers = #tpu.dot_dimension_numbers<[1], [0], [0], [1], [0, 0, 1, 1], [], []>} : vector<64x16xf32>, vector<16x256xf32>, vector<64x256xf32> -> vector<64x256xf32>
    %5 = vector.extract_strided_slice %2 {offsets = [0, 0], sizes = [64, 1], strides = [1, 1]} : vector<64x4xf32> to vector<64x1xf32>
    %6 = vector.broadcast %5 : vector<64x1xf32> to vector<64x256xf32>
    %7 = arith.addf %4, %6 : vector<64x256xf32>
    %cst_6 = arith.constant 3.000000e+00 : f32
    %8 = vector.broadcast %cst_6 : f32 to vector<64x256xf32>
    %9 = arith.addf %7, %8 : vector<64x256xf32>
    %cst_7 = arith.constant 0.000000e+00 : f32
    %cst_8 = arith.constant 6.000000e+00 : f32
    %10 = vector.broadcast %cst_7 : f32 to vector<64x256xf32>
    %11 = arith.maximumf %10, %9 : vector<64x256xf32>
    %12 = vector.broadcast %cst_8 : f32 to vector<64x256xf32>
    %13 = arith.minimumf %12, %11 : vector<64x256xf32>
    %14 = arith.mulf %7, %13 : vector<64x256xf32>
    %cst_9 = arith.constant 0.166666672 : f32
    %15 = vector.broadcast %cst_9 : f32 to vector<64x256xf32>
    %16 = arith.mulf %14, %15 : vector<64x256xf32>
    %c0_10 = arith.constant 0 : index
    %c0_11 = arith.constant 0 : index
    %17 = vector.load %arg3[%c0_10, %c0_11] : memref<64x9xf32, #tpu.memory_space<vmem>>, vector<64x9xf32>
    %c0_12 = arith.constant 0 : index
    %c0_13 = arith.constant 0 : index
    %18 = vector.load %arg9[%c0_12, %c0_13] : memref<9x256xf32, #tpu.memory_space<vmem>>, vector<9x256xf32>
    %cst_14 = arith.constant 0.000000e+00 : f32
    %19 = vector.broadcast %cst_14 : f32 to vector<64x256xf32>
    %20 = vector.extract_strided_slice %16 {offsets = [0, 239], sizes = [64, 17], strides = [1, 1]} : vector<64x256xf32> to vector<64x17xf32>
    %21 = vector.extract_strided_slice %16 {offsets = [0, 0], sizes = [64, 239], strides = [1, 1]} : vector<64x256xf32> to vector<64x239xf32>
    %22 = tpu.concatenate %20, %21 in 1 : vector<64x17xf32>, vector<64x239xf32> -> vector<64x256xf32>
    %23 = vector.extract_strided_slice %18 {offsets = [0, 0], sizes = [1, 256], strides = [1, 1]} : vector<9x256xf32> to vector<1x256xf32>
    %24 = vector.broadcast %23 : vector<1x256xf32> to vector<64x256xf32>
    %25 = arith.mulf %22, %24 : vector<64x256xf32>
    %26 = vector.extract_strided_slice %17 {offsets = [0, 0], sizes = [64, 1], strides = [1, 1]} : vector<64x9xf32> to vector<64x1xf32>
    %27 = vector.broadcast %26 : vector<64x1xf32> to vector<64x256xf32>
    %28 = arith.mulf %25, %27 : vector<64x256xf32>
    %29 = arith.addf %19, %28 : vector<64x256xf32>
    %30 = vector.extract_strided_slice %16 {offsets = [0, 240], sizes = [64, 16], strides = [1, 1]} : vector<64x256xf32> to vector<64x16xf32>
    %31 = vector.extract_strided_slice %16 {offsets = [0, 0], sizes = [64, 240], strides = [1, 1]} : vector<64x256xf32> to vector<64x240xf32>
    %32 = tpu.concatenate %30, %31 in 1 : vector<64x16xf32>, vector<64x240xf32> -> vector<64x256xf32>
    %33 = vector.extract_strided_slice %18 {offsets = [1, 0], sizes = [1, 256], strides = [1, 1]} : vector<9x256xf32> to vector<1x256xf32>
    %34 = vector.broadcast %33 : vector<1x256xf32> to vector<64x256xf32>
    %35 = arith.mulf %32, %34 : vector<64x256xf32>
    %36 = vector.extract_strided_slice %17 {offsets = [0, 1], sizes = [64, 1], strides = [1, 1]} : vector<64x9xf32> to vector<64x1xf32>
    %37 = vector.broadcast %36 : vector<64x1xf32> to vector<64x256xf32>
    %38 = arith.mulf %35, %37 : vector<64x256xf32>
    %39 = arith.addf %29, %38 : vector<64x256xf32>
    %40 = vector.extract_strided_slice %16 {offsets = [0, 241], sizes = [64, 15], strides = [1, 1]} : vector<64x256xf32> to vector<64x15xf32>
    %41 = vector.extract_strided_slice %16 {offsets = [0, 0], sizes = [64, 241], strides = [1, 1]} : vector<64x256xf32> to vector<64x241xf32>
    %42 = tpu.concatenate %40, %41 in 1 : vector<64x15xf32>, vector<64x241xf32> -> vector<64x256xf32>
    %43 = vector.extract_strided_slice %18 {offsets = [2, 0], sizes = [1, 256], strides = [1, 1]} : vector<9x256xf32> to vector<1x256xf32>
    %44 = vector.broadcast %43 : vector<1x256xf32> to vector<64x256xf32>
    %45 = arith.mulf %42, %44 : vector<64x256xf32>
    %46 = vector.extract_strided_slice %17 {offsets = [0, 2], sizes = [64, 1], strides = [1, 1]} : vector<64x9xf32> to vector<64x1xf32>
    %47 = vector.broadcast %46 : vector<64x1xf32> to vector<64x256xf32>
    %48 = arith.mulf %45, %47 : vector<64x256xf32>
    %49 = arith.addf %39, %48 : vector<64x256xf32>
    %50 = vector.extract_strided_slice %16 {offsets = [0, 255], sizes = [64, 1], strides = [1, 1]} : vector<64x256xf32> to vector<64x1xf32>
    %51 = vector.extract_strided_slice %16 {offsets = [0, 0], sizes = [64, 255], strides = [1, 1]} : vector<64x256xf32> to vector<64x255xf32>
    %52 = tpu.concatenate %50, %51 in 1 : vector<64x1xf32>, vector<64x255xf32> -> vector<64x256xf32>
    %53 = vector.extract_strided_slice %18 {offsets = [3, 0], sizes = [1, 256], strides = [1, 1]} : vector<9x256xf32> to vector<1x256xf32>
    %54 = vector.broadcast %53 : vector<1x256xf32> to vector<64x256xf32>
    %55 = arith.mulf %52, %54 : vector<64x256xf32>
    %56 = vector.extract_strided_slice %17 {offsets = [0, 3], sizes = [64, 1], strides = [1, 1]} : vector<64x9xf32> to vector<64x1xf32>
    %57 = vector.broadcast %56 : vector<64x1xf32> to vector<64x256xf32>
    %58 = arith.mulf %55, %57 : vector<64x256xf32>
    %59 = arith.addf %49, %58 : vector<64x256xf32>
    %60 = vector.extract_strided_slice %18 {offsets = [4, 0], sizes = [1, 256], strides = [1, 1]} : vector<9x256xf32> to vector<1x256xf32>
    %61 = vector.broadcast %60 : vector<1x256xf32> to vector<64x256xf32>
    %62 = arith.mulf %16, %61 : vector<64x256xf32>
    %63 = vector.extract_strided_slice %17 {offsets = [0, 4], sizes = [64, 1], strides = [1, 1]} : vector<64x9xf32> to vector<64x1xf32>
    %64 = vector.broadcast %63 : vector<64x1xf32> to vector<64x256xf32>
    %65 = arith.mulf %62, %64 : vector<64x256xf32>
    %66 = arith.addf %59, %65 : vector<64x256xf32>
    %67 = vector.extract_strided_slice %16 {offsets = [0, 1], sizes = [64, 255], strides = [1, 1]} : vector<64x256xf32> to vector<64x255xf32>
    %68 = vector.extract_strided_slice %16 {offsets = [0, 0], sizes = [64, 1], strides = [1, 1]} : vector<64x256xf32> to vector<64x1xf32>
    %69 = tpu.concatenate %67, %68 in 1 : vector<64x255xf32>, vector<64x1xf32> -> vector<64x256xf32>
    %70 = vector.extract_strided_slice %18 {offsets = [5, 0], sizes = [1, 256], strides = [1, 1]} : vector<9x256xf32> to vector<1x256xf32>
    %71 = vector.broadcast %70 : vector<1x256xf32> to vector<64x256xf32>
    %72 = arith.mulf %69, %71 : vector<64x256xf32>
    %73 = vector.extract_strided_slice %17 {offsets = [0, 5], sizes = [64, 1], strides = [1, 1]} : vector<64x9xf32> to vector<64x1xf32>
    %74 = vector.broadcast %73 : vector<64x1xf32> to vector<64x256xf32>
    %75 = arith.mulf %72, %74 : vector<64x256xf32>
    %76 = arith.addf %66, %75 : vector<64x256xf32>
    %77 = vector.extract_strided_slice %16 {offsets = [0, 15], sizes = [64, 241], strides = [1, 1]} : vector<64x256xf32> to vector<64x241xf32>
    %78 = vector.extract_strided_slice %16 {offsets = [0, 0], sizes = [64, 15], strides = [1, 1]} : vector<64x256xf32> to vector<64x15xf32>
    %79 = tpu.concatenate %77, %78 in 1 : vector<64x241xf32>, vector<64x15xf32> -> vector<64x256xf32>
    %80 = vector.extract_strided_slice %18 {offsets = [6, 0], sizes = [1, 256], strides = [1, 1]} : vector<9x256xf32> to vector<1x256xf32>
    %81 = vector.broadcast %80 : vector<1x256xf32> to vector<64x256xf32>
    %82 = arith.mulf %79, %81 : vector<64x256xf32>
    %83 = vector.extract_strided_slice %17 {offsets = [0, 6], sizes = [64, 1], strides = [1, 1]} : vector<64x9xf32> to vector<64x1xf32>
    %84 = vector.broadcast %83 : vector<64x1xf32> to vector<64x256xf32>
    %85 = arith.mulf %82, %84 : vector<64x256xf32>
    %86 = arith.addf %76, %85 : vector<64x256xf32>
    %87 = vector.extract_strided_slice %16 {offsets = [0, 16], sizes = [64, 240], strides = [1, 1]} : vector<64x256xf32> to vector<64x240xf32>
    %88 = vector.extract_strided_slice %16 {offsets = [0, 0], sizes = [64, 16], strides = [1, 1]} : vector<64x256xf32> to vector<64x16xf32>
    %89 = tpu.concatenate %87, %88 in 1 : vector<64x240xf32>, vector<64x16xf32> -> vector<64x256xf32>
    %90 = vector.extract_strided_slice %18 {offsets = [7, 0], sizes = [1, 256], strides = [1, 1]} : vector<9x256xf32> to vector<1x256xf32>
    %91 = vector.broadcast %90 : vector<1x256xf32> to vector<64x256xf32>
    %92 = arith.mulf %89, %91 : vector<64x256xf32>
    %93 = vector.extract_strided_slice %17 {offsets = [0, 7], sizes = [64, 1], strides = [1, 1]} : vector<64x9xf32> to vector<64x1xf32>
    %94 = vector.broadcast %93 : vector<64x1xf32> to vector<64x256xf32>
    %95 = arith.mulf %92, %94 : vector<64x256xf32>
    %96 = arith.addf %86, %95 : vector<64x256xf32>
    %97 = vector.extract_strided_slice %16 {offsets = [0, 17], sizes = [64, 239], strides = [1, 1]} : vector<64x256xf32> to vector<64x239xf32>
    %98 = vector.extract_strided_slice %16 {offsets = [0, 0], sizes = [64, 17], strides = [1, 1]} : vector<64x256xf32> to vector<64x17xf32>
    %99 = tpu.concatenate %97, %98 in 1 : vector<64x239xf32>, vector<64x17xf32> -> vector<64x256xf32>
    %100 = vector.extract_strided_slice %18 {offsets = [8, 0], sizes = [1, 256], strides = [1, 1]} : vector<9x256xf32> to vector<1x256xf32>
    %101 = vector.broadcast %100 : vector<1x256xf32> to vector<64x256xf32>
    %102 = arith.mulf %99, %101 : vector<64x256xf32>
    %103 = vector.extract_strided_slice %17 {offsets = [0, 8], sizes = [64, 1], strides = [1, 1]} : vector<64x9xf32> to vector<64x1xf32>
    %104 = vector.broadcast %103 : vector<64x1xf32> to vector<64x256xf32>
    %105 = arith.mulf %102, %104 : vector<64x256xf32>
    %106 = arith.addf %96, %105 : vector<64x256xf32>
    %107 = vector.extract_strided_slice %2 {offsets = [0, 1], sizes = [64, 1], strides = [1, 1]} : vector<64x4xf32> to vector<64x1xf32>
    %108 = vector.broadcast %107 : vector<64x1xf32> to vector<64x256xf32>
    %109 = arith.addf %106, %108 : vector<64x256xf32>
    %cst_15 = arith.constant 3.000000e+00 : f32
    %110 = vector.broadcast %cst_15 : f32 to vector<64x256xf32>
    %111 = arith.addf %109, %110 : vector<64x256xf32>
    %cst_16 = arith.constant 0.000000e+00 : f32
    %cst_17 = arith.constant 6.000000e+00 : f32
    %112 = vector.broadcast %cst_16 : f32 to vector<64x256xf32>
    %113 = arith.maximumf %112, %111 : vector<64x256xf32>
    %114 = vector.broadcast %cst_17 : f32 to vector<64x256xf32>
    %115 = arith.minimumf %114, %113 : vector<64x256xf32>
    %116 = arith.mulf %109, %115 : vector<64x256xf32>
    %cst_18 = arith.constant 0.166666672 : f32
    %117 = vector.broadcast %cst_18 : f32 to vector<64x256xf32>
    %118 = arith.mulf %116, %117 : vector<64x256xf32>
    %cst_19 = arith.constant dense<0.000000e+00> : vector<64xf32>
    %119 = vector.multi_reduction <add>, %118, %cst_19 [1] : vector<64x256xf32> to vector<64xf32>
    %120 = vector.shape_cast %119 : vector<64xf32> to vector<64x1xf32>
    %cst_20 = arith.constant 2.560000e+02 : f32
    %121 = vector.broadcast %cst_20 : f32 to vector<64x1xf32>
    %122 = arith.divf %120, %121 : vector<64x1xf32>
    %c0_21 = arith.constant 0 : index
    %c0_22 = arith.constant 0 : index
    %123 = vector.load %arg4[%c0_21, %c0_22] : memref<64x16xf32, #tpu.memory_space<vmem>>, vector<64x16xf32>
    %124 = vector.broadcast %122 : vector<64x1xf32> to vector<64x16xf32>
    %125 = arith.mulf %123, %124 : vector<64x16xf32>
    %cst_23 = arith.constant dense<0.000000e+00> : vector<16xf32>
    %126 = vector.multi_reduction <add>, %125, %cst_23 [0] : vector<64x16xf32> to vector<16xf32>
    %127 = vector.shape_cast %126 : vector<16xf32> to vector<1x16xf32>
    %c0_24 = arith.constant 0 : index
    %c0_25 = arith.constant 0 : index
    %128 = vector.load %arg7[%c0_24, %c0_25] : memref<1x16xf32, #tpu.memory_space<vmem>>, vector<1x16xf32>
    %129 = arith.addf %127, %128 : vector<1x16xf32>
    %cst_26 = arith.constant 0.000000e+00 : f32
    %130 = vector.broadcast %cst_26 : f32 to vector<1x16xf32>
    %131 = arith.maximumf %129, %130 : vector<1x16xf32>
    %c0_27 = arith.constant 0 : index
    %c0_28 = arith.constant 0 : index
    %132 = vector.load %arg5[%c0_27, %c0_28] : memref<64x16xf32, #tpu.memory_space<vmem>>, vector<64x16xf32>
    %133 = vector.broadcast %131 : vector<1x16xf32> to vector<64x16xf32>
    %134 = arith.mulf %132, %133 : vector<64x16xf32>
    %cst_29 = arith.constant dense<0.000000e+00> : vector<64xf32>
    %135 = vector.multi_reduction <add>, %134, %cst_29 [1] : vector<64x16xf32> to vector<64xf32>
    %136 = vector.shape_cast %135 : vector<64xf32> to vector<64x1xf32>
    %137 = vector.extract_strided_slice %2 {offsets = [0, 2], sizes = [64, 1], strides = [1, 1]} : vector<64x4xf32> to vector<64x1xf32>
    %138 = arith.addf %136, %137 : vector<64x1xf32>
    %cst_30 = arith.constant 0.166666672 : f32
    %139 = vector.broadcast %cst_30 : f32 to vector<64x1xf32>
    %140 = arith.mulf %138, %139 : vector<64x1xf32>
    %cst_31 = arith.constant 5.000000e-01 : f32
    %141 = vector.broadcast %cst_31 : f32 to vector<64x1xf32>
    %142 = arith.addf %140, %141 : vector<64x1xf32>
    %cst_32 = arith.constant 0.000000e+00 : f32
    %cst_33 = arith.constant 1.000000e+00 : f32
    %143 = vector.broadcast %cst_32 : f32 to vector<64x1xf32>
    %144 = arith.maximumf %143, %142 : vector<64x1xf32>
    %145 = vector.broadcast %cst_33 : f32 to vector<64x1xf32>
    %146 = arith.minimumf %145, %144 : vector<64x1xf32>
    %147 = vector.broadcast %146 : vector<64x1xf32> to vector<64x256xf32>
    %148 = arith.mulf %118, %147 : vector<64x256xf32>
    %c0_34 = arith.constant 0 : index
    %c0_35 = arith.constant 0 : index
    %149 = vector.load %arg6[%c0_34, %c0_35] : memref<16x64xf32, #tpu.memory_space<vmem>>, vector<16x64xf32>
    %cst_36 = arith.constant dense<0.000000e+00> : vector<16x256xf32>
    %150 = tpu.matmul %149, %148, %cst_36 {dimension_numbers = #tpu.dot_dimension_numbers<[1], [0], [0], [1], [0, 0, 1, 1], [], []>} : vector<16x64xf32>, vector<64x256xf32>, vector<16x256xf32> -> vector<16x256xf32>
    %151 = vector.extract_strided_slice %2 {offsets = [0, 3], sizes = [16, 1], strides = [1, 1]} : vector<64x4xf32> to vector<16x1xf32>
    %152 = vector.broadcast %151 : vector<16x1xf32> to vector<16x256xf32>
    %153 = arith.addf %150, %152 : vector<16x256xf32>
    %154 = arith.addf %153, %1 : vector<16x256xf32>
    %c0_37 = arith.constant 0 : index
    %c0_38 = arith.constant 0 : index
    %c0_39 = arith.constant 0 : index
    %155 = vector.load %arg10[%c0_37, %c0_38, %c0_39] : memref<1x16x256xf32, #tpu.memory_space<vmem>>, vector<1x16x256xf32>
    %156 = vector.shape_cast %155 : vector<1x16x256xf32> to vector<16x256xf32>
    %157 = vector.shape_cast %154 : vector<16x256xf32> to vector<1x16x256xf32>
    tpu.vector_store %arg10[%c0_37, %c0_38, %c0_39], %157 {strides = array<i32>} : memref<1x16x256xf32, #tpu.memory_space<vmem>>, vector<1x16x256xf32>,
    return
  }
  func.func @transform_0(%arg0: i32) -> (i32, i32, i32) {
    %c0_i32 = arith.constant 0 : i32
    %c0_i32_0 = arith.constant 0 : i32
    %c0_i32_1 = arith.constant 0 : i32
    return %arg0, %c0_i32, %c0_i32_0 : i32, i32, i32
  }
  func.func @transform_1(%arg0: i32) -> (i32, i32) {
    %c0_i32 = arith.constant 0 : i32
    %c0_i32_0 = arith.constant 0 : i32
    %c0_i32_1 = arith.constant 0 : i32
    return %c0_i32, %c0_i32_0 : i32, i32
  }
  func.func @transform_2(%arg0: i32) -> (i32, i32) {
    %c0_i32 = arith.constant 0 : i32
    %c0_i32_0 = arith.constant 0 : i32
    %c0_i32_1 = arith.constant 0 : i32
    return %c0_i32, %c0_i32_0 : i32, i32
  }
  func.func @transform_3(%arg0: i32) -> (i32, i32) {
    %c0_i32 = arith.constant 0 : i32
    %c0_i32_0 = arith.constant 0 : i32
    %c0_i32_1 = arith.constant 0 : i32
    return %c0_i32, %c0_i32_0 : i32, i32
  }
  func.func @transform_4(%arg0: i32) -> (i32, i32) {
    %c0_i32 = arith.constant 0 : i32
    %c0_i32_0 = arith.constant 0 : i32
    %c0_i32_1 = arith.constant 0 : i32
    return %c0_i32, %c0_i32_0 : i32, i32
  }
  func.func @transform_5(%arg0: i32) -> (i32, i32) {
    %c0_i32 = arith.constant 0 : i32
    %c0_i32_0 = arith.constant 0 : i32
    %c0_i32_1 = arith.constant 0 : i32
    return %c0_i32, %c0_i32_0 : i32, i32
  }
  func.func @transform_6(%arg0: i32) -> (i32, i32) {
    %c0_i32 = arith.constant 0 : i32
    %c0_i32_0 = arith.constant 0 : i32
    %c0_i32_1 = arith.constant 0 : i32
    return %c0_i32, %c0_i32_0 : i32, i32
  }
  func.func @transform_7(%arg0: i32) -> (i32, i32) {
    %c0_i32 = arith.constant 0 : i32
    %c0_i32_0 = arith.constant 0 : i32
    %c0_i32_1 = arith.constant 0 : i32
    return %c0_i32, %c0_i32_0 : i32, i32
  }
  func.func @transform_8(%arg0: i32) -> (i32, i32) {
    %c0_i32 = arith.constant 0 : i32
    %c0_i32_0 = arith.constant 0 : i32
    %c0_i32_1 = arith.constant 0 : i32
    return %c0_i32, %c0_i32_0 : i32, i32
  }
  func.func @transform_9(%arg0: i32) -> (i32, i32, i32) {
    %c0_i32 = arith.constant 0 : i32
    %c0_i32_0 = arith.constant 0 : i32
    %c0_i32_1 = arith.constant 0 : i32
    return %arg0, %c0_i32, %c0_i32_0 : i32, i32, i32
  }
}

</mosaic_0001>

<llo_original>
// kernel: tpu_custom_call.1
$region0: #{tpu_custom_call.1}
  #allocation0 [shape = 'u32[]', space=smem, size = 0x4, offset = 0x4, fixed_abs, tag = 'smem constant byte address 0x4 - core index']
  #allocation1 [shape = 'u32[72,128]{1,0:T(1,128)}', space=vmem, size = 0x9000, scoped, tag = 'internal scratch']
  %s0 = inlined_call_operand.vmem [shape: f32[2,16,256], index: 0, kind: input, shape index: {}]
  %s1 = inlined_call_operand.vmem [shape: f32[64,16], index: 1, kind: input, shape index: {}]
  %s2 = inlined_call_operand.vmem [shape: f32[64,9], index: 2, kind: input, shape index: {}]
  %s3 = inlined_call_operand.vmem [shape: f32[64,16], index: 3, kind: input, shape index: {}]
  %s4 = inlined_call_operand.vmem [shape: f32[64,16], index: 4, kind: input, shape index: {}]
  %s5 = inlined_call_operand.vmem [shape: f32[16,64], index: 5, kind: input, shape index: {}]
  %s6 = inlined_call_operand.vmem [shape: f32[1,16], index: 6, kind: input, shape index: {}]
  %s7 = inlined_call_operand.vmem [shape: f32[64,4], index: 7, kind: input, shape index: {}]
  %s8 = inlined_call_operand.vmem [shape: f32[9,256], index: 8, kind: input, shape index: {}]
  %s9 = inlined_call_operand.hbm [shape: f32[2,16,256], index: 9, kind: output, shape index: {}]
  %s10 = sld [smem:[#allocation0]]
  $region69: #{tpu_custom_call.1} parent=0
    _
  %s12 = ssub.s32 1, %s10
  %s13 = scalar_select 0, %s12, %s10
  $region1: #{tpu_custom_call.1} parent=0
    #allocation2 [shape = 'u8[32768]{0}', space=vmem, size = 0x8000, scoped, tag = 'output window, operand 0']
    #allocation3 [shape = 's32[2]{0}', space=sflag, size = 0x8, scoped, tag = 'scoped memory for tpu_custom_call.1']
    %14 = vsyncpa [#allocation3], 0
    %s15 = scalar_lea.sflag [#allocation3], 1
    %16 = vsyncpa %s15, 0
    loop: start=0, step=1, limit=4
    $region2: #{tpu_custom_call.1} parent=1 // loop_pre_header
      _
    $region3: #{tpu_custom_call.1} parent=1 // loop_header
      %s18 = sphi 0, %s22
      %p19 = scmp.ge.s32.totalorder %s18, 4
      %s28 = sphi 0, %s30
      %s31 = sphi 0, %s28
      %s32 = sphi 0, %s31
      %s48 = sphi 0, %s32
      %s52 = sphi 0, %s52
      %s54 = sphi 0, %s52
      %s55 = sphi 0, %s54
      %s69 = sphi 0, %s55
      %s73 = sphi 0, %s73
      %s75 = sphi 0, %s73
      %s76 = sphi 0, %s75
      %s90 = sphi 0, %s76
      %s94 = sphi 0, %s94
      %s96 = sphi 0, %s94
      %s97 = sphi 0, %s96
      %s111 = sphi 0, %s97
      %s115 = sphi 0, %s115
      %s117 = sphi 0, %s115
      %s118 = sphi 0, %s117
      %s132 = sphi 0, %s118
      %s136 = sphi 0, %s136
      %s138 = sphi 0, %s136
      %s139 = sphi 0, %s138
      %s153 = sphi 0, %s139
      %s157 = sphi 0, %s157
      %s159 = sphi 0, %s157
      %s160 = sphi 0, %s159
      %s174 = sphi 0, %s160
      %s178 = sphi 0, %s178
      %s180 = sphi 0, %s178
      %s181 = sphi 0, %s180
      %s195 = sphi 0, %s181
      %s199 = sphi 0, %s199
      %s201 = sphi 0, %s199
      %s202 = sphi 0, %s201
      %s216 = sphi 0, %s202
      %s222 = sphi 0, %s224
      %s225 = sphi 0, %s222
      %s226 = sphi 0, %s225
      %s242 = sphi 0, %s226
    $region4: #{tpu_custom_call.1} parent=1 // loop_header_branch
      %21 = sbr.rel (%p19) target = $region8
    $region5: #{tpu_custom_call.1} parent=1 // loop_body
      %s23 = ssub.s32 %s18, 1
      %s24 = ssub.s32 %s18, 2
      %s25 = sadd.s32 %s18, 1
      %s26 = ssub.s32 %s18, %s25
      %p27 = scmp.eq.s32.totalorder %s26, 0
      %s29 = sadd.s32 %s28, 1
      %s30 = scalar_select %p27, %s28, %s29
      %p33 = pneg %p27
      %p34 = scmp.eq.s32.totalorder %s18, 1
      %p35 = por %p33, %p34
      %p36 = scmp.ne.s32.totalorder %s28, %s31
      %p37 = scmp.eq.s32.totalorder %s18, 0
      %p38 = por %p36, %p37
      %p39 = scmp.ne.s32.totalorder %s28, %s31
      %p40 = scmp.eq.s32.totalorder %s23, 1
      %p41 = por %p39, %p40
      %p42 = scmp.ne.s32.totalorder %s31, %s32
      %p43 = scmp.eq.s32.totalorder %s23, 0
      %p44 = por %p42, %p43
      %p45 = scmp.ne.s32.totalorder %s31, %s32
      %p46 = scmp.eq.s32.totalorder %s24, 1
      %p47 = por %p45, %p46
      %p49 = scmp.ne.s32.totalorder %s32, %s48
      %p50 = scmp.eq.s32.totalorder %s24, 0
      %p51 = por %p49, %p50
      %s53 = sadd.s32 %s52, 1
      %p56 = scmp.eq.s32.totalorder %s18, 1
      %p57 = scmp.ne.s32.totalorder %s52, %s54
      %p58 = scmp.eq.s32.totalorder %s18, 0
      %p59 = por %p57, %p58
      %p60 = scmp.ne.s32.totalorder %s52, %s54
      %p61 = scmp.eq.s32.totalorder %s23, 1
      %p62 = por %p60, %p61
      %p63 = scmp.ne.s32.totalorder %s54, %s55
      %p64 = scmp.eq.s32.totalorder %s23, 0
      %p65 = por %p63, %p64
      %p66 = scmp.ne.s32.totalorder %s54, %s55
      %p67 = scmp.eq.s32.totalorder %s24, 1
      %p68 = por %p66, %p67
      %p70 = scmp.ne.s32.totalorder %s55, %s69
      %p71 = scmp.eq.s32.totalorder %s24, 0
      %p72 = por %p70, %p71
      %s74 = sadd.s32 %s73, 1
      %p77 = scmp.eq.s32.totalorder %s18, 1
      %p78 = scmp.ne.s32.totalorder %s73, %s75
      %p79 = scmp.eq.s32.totalorder %s18, 0
      %p80 = por %p78, %p79
      %p81 = scmp.ne.s32.totalorder %s73, %s75
      %p82 = scmp.eq.s32.totalorder %s23, 1
      %p83 = por %p81, %p82
      %p84 = scmp.ne.s32.totalorder %s75, %s76
      %p85 = scmp.eq.s32.totalorder %s23, 0
      %p86 = por %p84, %p85
      %p87 = scmp.ne.s32.totalorder %s75, %s76
      %p88 = scmp.eq.s32.totalorder %s24, 1
      %p89 = por %p87, %p88
      %p91 = scmp.ne.s32.totalorder %s76, %s90
      %p92 = scmp.eq.s32.totalorder %s24, 0
      %p93 = por %p91, %p92
      %s95 = sadd.s32 %s94, 1
      %p98 = scmp.eq.s32.totalorder %s18, 1
      %p99 = scmp.ne.s32.totalorder %s94, %s96
      %p100 = scmp.eq.s32.totalorder %s18, 0
      %p101 = por %p99, %p100
      %p102 = scmp.ne.s32.totalorder %s94, %s96
      %p103 = scmp.eq.s32.totalorder %s23, 1
      %p104 = por %p102, %p103
      %p105 = scmp.ne.s32.totalorder %s96, %s97
      %p106 = scmp.eq.s32.totalorder %s23, 0
      %p107 = por %p105, %p106
      %p108 = scmp.ne.s32.totalorder %s96, %s97
      %p109 = scmp.eq.s32.totalorder %s24, 1
      %p110 = por %p108, %p109
      %p112 = scmp.ne.s32.totalorder %s97, %s111
      %p113 = scmp.eq.s32.totalorder %s24, 0
      %p114 = por %p112, %p113
      %s116 = sadd.s32 %s115, 1
      %p119 = scmp.eq.s32.totalorder %s18, 1
      %p120 = scmp.ne.s32.totalorder %s115, %s117
      %p121 = scmp.eq.s32.totalorder %s18, 0
      %p122 = por %p120, %p121
      %p123 = scmp.ne.s32.totalorder %s115, %s117
      %p124 = scmp.eq.s32.totalorder %s23, 1
      %p125 = por %p123, %p124
      %p126 = scmp.ne.s32.totalorder %s117, %s118
      %p127 = scmp.eq.s32.totalorder %s23, 0
      %p128 = por %p126, %p127
      %p129 = scmp.ne.s32.totalorder %s117, %s118
      %p130 = scmp.eq.s32.totalorder %s24, 1
      %p131 = por %p129, %p130
      %p133 = scmp.ne.s32.totalorder %s118, %s132
      %p134 = scmp.eq.s32.totalorder %s24, 0
      %p135 = por %p133, %p134
      %s137 = sadd.s32 %s136, 1
      %p140 = scmp.eq.s32.totalorder %s18, 1
      %p141 = scmp.ne.s32.totalorder %s136, %s138
      %p142 = scmp.eq.s32.totalorder %s18, 0
      %p143 = por %p141, %p142
      %p144 = scmp.ne.s32.totalorder %s136, %s138
      %p145 = scmp.eq.s32.totalorder %s23, 1
      %p146 = por %p144, %p145
      %p147 = scmp.ne.s32.totalorder %s138, %s139
      %p148 = scmp.eq.s32.totalorder %s23, 0
      %p149 = por %p147, %p148
      %p150 = scmp.ne.s32.totalorder %s138, %s139
      %p151 = scmp.eq.s32.totalorder %s24, 1
      %p152 = por %p150, %p151
      %p154 = scmp.ne.s32.totalorder %s139, %s153
      %p155 = scmp.eq.s32.totalorder %s24, 0
      %p156 = por %p154, %p155
      %s158 = sadd.s32 %s157, 1
      %p161 = scmp.eq.s32.totalorder %s18, 1
      %p162 = scmp.ne.s32.totalorder %s157, %s159
      %p163 = scmp.eq.s32.totalorder %s18, 0
      %p164 = por %p162, %p163
      %p165 = scmp.ne.s32.totalorder %s157, %s159
      %p166 = scmp.eq.s32.totalorder %s23, 1
      %p167 = por %p165, %p166
      %p168 = scmp.ne.s32.totalorder %s159, %s160
      %p169 = scmp.eq.s32.totalorder %s23, 0
      %p170 = por %p168, %p169
      %p171 = scmp.ne.s32.totalorder %s159, %s160
      %p172 = scmp.eq.s32.totalorder %s24, 1
      %p173 = por %p171, %p172
      %p175 = scmp.ne.s32.totalorder %s160, %s174
      %p176 = scmp.eq.s32.totalorder %s24, 0
      %p177 = por %p175, %p176
      %s179 = sadd.s32 %s178, 1
      %p182 = scmp.eq.s32.totalorder %s18, 1
      %p183 = scmp.ne.s32.totalorder %s178, %s180
      %p184 = scmp.eq.s32.totalorder %s18, 0
      %p185 = por %p183, %p184
      %p186 = scmp.ne.s32.totalorder %s178, %s180
      %p187 = scmp.eq.s32.totalorder %s23, 1
      %p188 = por %p186, %p187
      %p189 = scmp.ne.s32.totalorder %s180, %s181
      %p190 = scmp.eq.s32.totalorder %s23, 0
      %p191 = por %p189, %p190
      %p192 = scmp.ne.s32.totalorder %s180, %s181
      %p193 = scmp.eq.s32.totalorder %s24, 1
      %p194 = por %p192, %p193
      %p196 = scmp.ne.s32.totalorder %s181, %s195
      %p197 = scmp.eq.s32.totalorder %s24, 0
      %p198 = por %p196, %p197
      %s200 = sadd.s32 %s199, 1
      %p203 = scmp.eq.s32.totalorder %s18, 1
      %p204 = scmp.ne.s32.totalorder %s199, %s201
      %p205 = scmp.eq.s32.totalorder %s18, 0
      %p206 = por %p204, %p205
      %p207 = scmp.ne.s32.totalorder %s199, %s201
      %p208 = scmp.eq.s32.totalorder %s23, 1
      %p209 = por %p207, %p208
      %p210 = scmp.ne.s32.totalorder %s201, %s202
      %p211 = scmp.eq.s32.totalorder %s23, 0
      %p212 = por %p210, %p211
      %p213 = scmp.ne.s32.totalorder %s201, %s202
      %p214 = scmp.eq.s32.totalorder %s24, 1
      %p215 = por %p213, %p214
      %p217 = scmp.ne.s32.totalorder %s202, %s216
      %p218 = scmp.eq.s32.totalorder %s24, 0
      %p219 = por %p217, %p218
      %s220 = ssub.s32 %s18, %s25
      %p221 = scmp.eq.s32.totalorder %s220, 0
      %s223 = sadd.s32 %s222, 1
      %s224 = scalar_select %p221, %s222, %s223
      %p227 = pneg %p221
      %p228 = scmp.eq.s32.totalorder %s18, 1
      %p229 = por %p227, %p228
      %p230 = scmp.ne.s32.totalorder %s222, %s225
      %p231 = scmp.eq.s32.totalorder %s18, 0
      %p232 = por %p230, %p231
      %p233 = scmp.ne.s32.totalorder %s222, %s225
      %p234 = scmp.eq.s32.totalorder %s23, 1
      %p235 = por %p233, %p234
      %p236 = scmp.ne.s32.totalorder %s225, %s226
      %p237 = scmp.eq.s32.totalorder %s23, 0
      %p238 = por %p236, %p237
      %p239 = scmp.ne.s32.totalorder %s225, %s226
      %p240 = scmp.eq.s32.totalorder %s24, 1
      %p241 = por %p239, %p240
      %p243 = scmp.ne.s32.totalorder %s226, %s242
      %p244 = scmp.eq.s32.totalorder %s24, 0
      %p245 = por %p243, %p244
      %p246 = scmp.le.s32.totalorder 1, %s18
      %p247 = scmp.lt.s32.totalorder %s18, 3
      %p248 = pnand %p246, %p247
      %p249 = pneg %p248
      // Predicated region
      $region9: #{tpu_custom_call.1} parent=5 // pred_check
        _
      $region10: #{tpu_custom_call.1} parent=5 // pred_check_branch
        %251 = sbr.rel (%p248) target = $region12
      $region11: #{tpu_custom_call.1} parent=5 // pred_region
        %s252 = ssub.s32 %s18, 1
        // Predicated region
        $region13: #{tpu_custom_call.1} parent=11 // pred_check
          %p253 = pneg %p65
        $region14: #{tpu_custom_call.1} parent=11 // pred_check_branch
          %255 = sbr.rel (%p253) target = $region16
        $region15: #{tpu_custom_call.1} parent=11 // pred_region
          _
        $region16: #{tpu_custom_call.1} parent=11 // pred_fallthru
          _
        // Predicated region
        $region17: #{tpu_custom_call.1} parent=11 // pred_check
          %p256 = pneg %p86
        $region18: #{tpu_custom_call.1} parent=11 // pred_check_branch
          %258 = sbr.rel (%p256) target = $region20
        $region19: #{tpu_custom_call.1} parent=11 // pred_region
          _
        $region20: #{tpu_custom_call.1} parent=11 // pred_fallthru
          _
        // Predicated region
        $region21: #{tpu_custom_call.1} parent=11 // pred_check
          %p259 = pneg %p107
        $region22: #{tpu_custom_call.1} parent=11 // pred_check_branch
          %261 = sbr.rel (%p259) target = $region24
        $region23: #{tpu_custom_call.1} parent=11 // pred_region
          _
        $region24: #{tpu_custom_call.1} parent=11 // pred_fallthru
          _
        // Predicated region
        $region25: #{tpu_custom_call.1} parent=11 // pred_check
          %p262 = pneg %p128
        $region26: #{tpu_custom_call.1} parent=11 // pred_check_branch
          %264 = sbr.rel (%p262) target = $region28
        $region27: #{tpu_custom_call.1} parent=11 // pred_region
          _
        $region28: #{tpu_custom_call.1} parent=11 // pred_fallthru
          _
        // Predicated region
        $region29: #{tpu_custom_call.1} parent=11 // pred_check
          %p265 = pneg %p149
        $region30: #{tpu_custom_call.1} parent=11 // pred_check_branch
          %267 = sbr.rel (%p265) target = $region32
        $region31: #{tpu_custom_call.1} parent=11 // pred_region
          _
        $region32: #{tpu_custom_call.1} parent=11 // pred_fallthru
          _
        // Predicated region
        $region33: #{tpu_custom_call.1} parent=11 // pred_check
          %p268 = pneg %p170
        $region34: #{tpu_custom_call.1} parent=11 // pred_check_branch
          %270 = sbr.rel (%p268) target = $region36
        $region35: #{tpu_custom_call.1} parent=11 // pred_region
          _
        $region36: #{tpu_custom_call.1} parent=11 // pred_fallthru
          _
        // Predicated region
        $region37: #{tpu_custom_call.1} parent=11 // pred_check
          %p271 = pneg %p191
        $region38: #{tpu_custom_call.1} parent=11 // pred_check_branch
          %273 = sbr.rel (%p271) target = $region40
        $region39: #{tpu_custom_call.1} parent=11 // pred_region
          _
        $region40: #{tpu_custom_call.1} parent=11 // pred_fallthru
          _
        // Predicated region
        $region41: #{tpu_custom_call.1} parent=11 // pred_check
          %p274 = pneg %p212
        $region42: #{tpu_custom_call.1} parent=11 // pred_check_branch
          %276 = sbr.rel (%p274) target = $region44
        $region43: #{tpu_custom_call.1} parent=11 // pred_region
          _
        $region44: #{tpu_custom_call.1} parent=11 // pred_fallthru
          _
      $region12: #{tpu_custom_call.1} parent=5 // pred_fallthru
        _
      %p277 = scmp.lt.s32.totalorder %s18, 2
      // Predicated region
      $region45: #{tpu_custom_call.1} parent=5 // pred_check
        %p278 = pneg %p277
      $region46: #{tpu_custom_call.1} parent=5 // pred_check_branch
        %280 = sbr.rel (%p278) target = $region48
      $region47: #{tpu_custom_call.1} parent=5 // pred_region
        // Predicated region
        $region49: #{tpu_custom_call.1} parent=47 // pred_check
          %p281 = pneg %p38
        $region50: #{tpu_custom_call.1} parent=47 // pred_check_branch
          %283 = sbr.rel (%p281) target = $region52
        $region51: #{tpu_custom_call.1} parent=47 // pred_region
          %p284 = scmp.lt.s32.totalorder %s18, 1
          %s285 = scalar_select %p284, %s18, 1
          %s286 = smul.addr %s285, 4
          %s287 = smul.addr %s286, 8
          %s288 = scalar_lea.vmem %s0, %s287
        $region52: #{tpu_custom_call.1} parent=47 // pred_fallthru
          _
      $region48: #{tpu_custom_call.1} parent=5 // pred_fallthru
        _
      %p289 = scmp.le.s32.totalorder 1, %s18
      %p290 = scmp.lt.s32.totalorder %s18, 3
      %p291 = pnand %p289, %p290
      %p292 = pneg %p291
      // Predicated region
      $region53: #{tpu_custom_call.1} parent=5 // pred_check
        _
      $region54: #{tpu_custom_call.1} parent=5 // pred_check_branch
        %294 = sbr.rel (%p291) target = $region56
      $region55: #{tpu_custom_call.1} parent=5 // pred_region
        %s295 = ssub.s32 %s18, 1
        %p296 = scmp.lt.s32.totalorder %s23, 1
        %s297 = scalar_select %p296, %s23, 1
        %s298 = smul.addr %s297, 4
        %s299 = smul.addr %s298, 8
        %s300 = scalar_lea.vmem %s0, %s299
        %p301 = pneg %p44
        %p302 = pneg %p41
        %p303 = pneg %p65
        %p304 = pneg %p62
        %p305 = pneg %p86
        %p306 = pneg %p83
        %p307 = pneg %p107
        %p308 = pneg %p104
        %p309 = pneg %p128
        %p310 = pneg %p125
        %p311 = pneg %p149
        %p312 = pneg %p146
        %p313 = pneg %p170
        %p314 = pneg %p167
        %p315 = pneg %p191
        %p316 = pneg %p188
        %p317 = pneg %p212
        %p318 = pneg %p209
        %p319 = pneg %p238
        %p320 = pneg %p235
        %s321 = sand.u32 %s225, 1
        %s322 = scalar_lea.sflag [#allocation3], %s321
        %s323 = sand.u32 %s225, 1
        %s324 = smul.addr %s323, 32
        %s325 = scalar_lea.vmem [#allocation2], %s324
        %p326 = scmp.lt.s32.totalorder %s23, 1
        %s327 = scalar_select %p326, %s23, 1
        %s328 = smul.addr %s327, 4
        %s329 = smul.addr %s328, 8
        %s330 = scalar_lea.vmem %s0, %s329
        %v331 = vld [vmem:[%s330] sm:$0xff]
        %v332 = vld [vmem:[%s330 + $0x8] sm:$0xff]
        %v333 = vld [vmem:[%s330 + $0x10] sm:$0xff]
        %v334 = vld [vmem:[%s330 + $0x18] sm:$0xff]
        %v335 = vld [vmem:[%s7] sm:$0xff]
        %v336 = vld [vmem:[%s7 + $0x8] sm:$0xff]
        %v337 = vld [vmem:[%s7 + $0x10] sm:$0xff]
        %v338 = vld [vmem:[%s7 + $0x18] sm:$0xff]
        %v339 = vld [vmem:[%s7 + $0x20] sm:$0xff]
        %v340 = vld [vmem:[%s7 + $0x28] sm:$0xff]
        %v341 = vld [vmem:[%s7 + $0x30] sm:$0xff]
        %v342 = vld [vmem:[%s7 + $0x38] sm:$0xff]
        %v343 = vld [vmem:[%s1] sm:$0xff]
        %v344 = vld [vmem:[%s1 + $0x8] sm:$0xff]
        %v345 = vld [vmem:[%s1 + $0x10] sm:$0xff]
        %v346 = vld [vmem:[%s1 + $0x18] sm:$0xff]
        %v347 = vld [vmem:[%s1 + $0x20] sm:$0xff]
        %v348 = vld [vmem:[%s1 + $0x28] sm:$0xff]
        %v349 = vld [vmem:[%s1 + $0x30] sm:$0xff]
        %v350 = vld [vmem:[%s1 + $0x38] sm:$0xff]
        %352 = vset.pattern.permute.xlu0 0
        %353 = vperm.xlu0 %352, %v335
        %v354 = vpop.permute.xlu0 %353
        %357 = vset.pattern.permute.xlu0 0
        %358 = vperm.xlu0 %357, %v336
        %v359 = vpop.permute.xlu0 %358
        %362 = vset.pattern.permute.xlu0 0
        %363 = vperm.xlu0 %362, %v337
        %v364 = vpop.permute.xlu0 %363
        %367 = vset.pattern.permute.xlu0 0
        %368 = vperm.xlu0 %367, %v338
        %v369 = vpop.permute.xlu0 %368
        %372 = vset.pattern.permute.xlu0 0
        %373 = vperm.xlu0 %372, %v339
        %v374 = vpop.permute.xlu0 %373
        %377 = vset.pattern.permute.xlu0 0
        %378 = vperm.xlu0 %377, %v340
        %v379 = vpop.permute.xlu0 %378
        %382 = vset.pattern.permute.xlu0 0
        %383 = vperm.xlu0 %382, %v341
        %v384 = vpop.permute.xlu0 %383
        %387 = vset.pattern.permute.xlu0 0
        %388 = vperm.xlu0 %387, %v342
        %v389 = vpop.permute.xlu0 %388
        %vm391 = vcmask 130048
        %v393 = vsel %vm391, %v343, 0
        %v396 = vsel %vm391, %v344, 0
        %v399 = vsel %vm391, %v345, 0
        %v402 = vsel %vm391, %v346, 0
        %v405 = vsel %vm391, %v347, 0
        %v408 = vsel %vm391, %v348, 0
        %v411 = vsel %vm391, %v349, 0
        %v414 = vsel %vm391, %v350, 0
        %416 = vmatpush.msra.mxu0 0.0
        %417 = vmatpush.msra.mxu0 0.0
        %418 = vmatpush.msra.mxu0 0.0
        %419 = vmatpush.msra.mxu0 0.0
        %420 = vmatpush.msra.mxu0 0.0
        %421 = vmatpush.msra.mxu0 0.0
        %422 = vmatpush.msra.mxu0 0.0
        %423 = vmatpush.msra.mxu0 0.0
        %424 = vmatpush.msra.mxu0 0.0
        %425 = vmatpush.msra.mxu0 0.0
        %426 = vmatpush.msra.mxu0 0.0
        %427 = vmatpush.msra.mxu0 0.0
        %428 = vmatpush.msra.mxu0 0.0
        %429 = vmatpush.msra.mxu0 0.0
        %430 = vmatpush.msra.mxu0 %v333
        %431 = vmatpush.msra.mxu0 %v331
        %432 = vmatmul.f32.gmra.mxu0 %v393
        %v433 = vpop.f32.mrf.mxu0
        %v434 = vadd.f32 %v354, %v433
        %435 = vmatmul.f32.gmra.mxu0 %v396
        %v436 = vpop.f32.mrf.mxu0
        %v437 = vadd.f32 %v359, %v436
        %438 = vmatmul.f32.gmra.mxu0 %v399
        %v439 = vpop.f32.mrf.mxu0
        %v440 = vadd.f32 %v364, %v439
        %441 = vmatmul.f32.gmra.mxu0 %v402
        %v442 = vpop.f32.mrf.mxu0
        %v443 = vadd.f32 %v369, %v442
        %444 = vmatmul.f32.gmra.mxu0 %v405
        %v445 = vpop.f32.mrf.mxu0
        %v446 = vadd.f32 %v374, %v445
        %447 = vmatmul.f32.gmra.mxu0 %v408
        %v448 = vpop.f32.mrf.mxu0
        %v449 = vadd.f32 %v379, %v448
        %450 = vmatmul.f32.gmra.mxu0 %v411
        %v451 = vpop.f32.mrf.mxu0
        %v452 = vadd.f32 %v384, %v451
        %453 = vmatmul.f32.gmra.mxu0 %v414
        %v454 = vpop.f32.mrf.mxu0
        %v455 = vadd.f32 %v389, %v454
        %456 = vdwg.mxu0
        %457 = vmatpush.msra.mxu0 0.0
        %458 = vmatpush.msra.mxu0 0.0
        %459 = vmatpush.msra.mxu0 0.0
        %460 = vmatpush.msra.mxu0 0.0
        %461 = vmatpush.msra.mxu0 0.0
        %462 = vmatpush.msra.mxu0 0.0
        %463 = vmatpush.msra.mxu0 0.0
        %464 = vmatpush.msra.mxu0 0.0
        %465 = vmatpush.msra.mxu0 0.0
        %466 = vmatpush.msra.mxu0 0.0
        %467 = vmatpush.msra.mxu0 0.0
        %468 = vmatpush.msra.mxu0 0.0
        %469 = vmatpush.msra.mxu0 0.0
        %470 = vmatpush.msra.mxu0 0.0
        %471 = vmatpush.msra.mxu0 %v334
        %472 = vmatpush.msra.mxu0 %v332
        %473 = vmatmul.f32.gmra.mxu0 %v393
        %v474 = vpop.f32.mrf.mxu0
        %v475 = vadd.f32 %v354, %v474
        %476 = vmatmul.f32.gmra.mxu0 %v396
        %v477 = vpop.f32.mrf.mxu0
        %v478 = vadd.f32 %v359, %v477
        %479 = vmatmul.f32.gmra.mxu0 %v399
        %v480 = vpop.f32.mrf.mxu0
        %v481 = vadd.f32 %v364, %v480
        %482 = vmatmul.f32.gmra.mxu0 %v402
        %v483 = vpop.f32.mrf.mxu0
        %v484 = vadd.f32 %v369, %v483
        %485 = vmatmul.f32.gmra.mxu0 %v405
        %v486 = vpop.f32.mrf.mxu0
        %v487 = vadd.f32 %v374, %v486
        %488 = vmatmul.f32.gmra.mxu0 %v408
        %v489 = vpop.f32.mrf.mxu0
        %v490 = vadd.f32 %v379, %v489
        %491 = vmatmul.f32.gmra.mxu0 %v411
        %v492 = vpop.f32.mrf.mxu0
        %v493 = vadd.f32 %v384, %v492
        %494 = vmatmul.f32.gmra.mxu0 %v414
        %v495 = vpop.f32.mrf.mxu0
        %v496 = vadd.f32 %v389, %v495
        %497 = vdwg.mxu0
        %v498 = vadd.f32 %v434, 3.0
        %v499 = vadd.f32 %v475, 3.0
        %v500 = vadd.f32 %v437, 3.0
        %v501 = vadd.f32 %v478, 3.0
        %v502 = vadd.f32 %v440, 3.0
        %v503 = vadd.f32 %v481, 3.0
        %v504 = vadd.f32 %v443, 3.0
        %v505 = vadd.f32 %v484, 3.0
        %v506 = vadd.f32 %v446, 3.0
        %v507 = vadd.f32 %v487, 3.0
        %v508 = vadd.f32 %v449, 3.0
        %v509 = vadd.f32 %v490, 3.0
        %v510 = vadd.f32 %v452, 3.0
        %v511 = vadd.f32 %v493, 3.0
        %v512 = vadd.f32 %v455, 3.0
        %v513 = vadd.f32 %v496, 3.0
        %v514 = vmax.f32 %v498, 0.0
        %v515 = vmax.f32 %v499, 0.0
        %v516 = vmax.f32 %v500, 0.0
        %v517 = vmax.f32 %v501, 0.0
        %v518 = vmax.f32 %v502, 0.0
        %v519 = vmax.f32 %v503, 0.0
        %v520 = vmax.f32 %v504, 0.0
        %v521 = vmax.f32 %v505, 0.0
        %v522 = vmax.f32 %v506, 0.0
        %v523 = vmax.f32 %v507, 0.0
        %v524 = vmax.f32 %v508, 0.0
        %v525 = vmax.f32 %v509, 0.0
        %v526 = vmax.f32 %v510, 0.0
        %v527 = vmax.f32 %v511, 0.0
        %v528 = vmax.f32 %v512, 0.0
        %v529 = vmax.f32 %v513, 0.0
        %v530 = vmin.f32 %v514, 6.0
        %v531 = vmin.f32 %v515, 6.0
        %v532 = vmin.f32 %v516, 6.0
        %v533 = vmin.f32 %v517, 6.0
        %v534 = vmin.f32 %v518, 6.0
        %v535 = vmin.f32 %v519, 6.0
        %v536 = vmin.f32 %v520, 6.0
        %v537 = vmin.f32 %v521, 6.0
        %v538 = vmin.f32 %v522, 6.0
        %v539 = vmin.f32 %v523, 6.0
        %v540 = vmin.f32 %v524, 6.0
        %v541 = vmin.f32 %v525, 6.0
        %v542 = vmin.f32 %v526, 6.0
        %v543 = vmin.f32 %v527, 6.0
        %v544 = vmin.f32 %v528, 6.0
        %v545 = vmin.f32 %v529, 6.0
        %v546 = vmul.f32 %v434, %v530
        %v547 = vmul.f32 %v475, %v531
        %v548 = vmul.f32 %v437, %v532
        %v549 = vmul.f32 %v478, %v533
        %v550 = vmul.f32 %v440, %v534
        %v551 = vmul.f32 %v481, %v535
        %v552 = vmul.f32 %v443, %v536
        %v553 = vmul.f32 %v484, %v537
        %v554 = vmul.f32 %v446, %v538
        %v555 = vmul.f32 %v487, %v539
        %v556 = vmul.f32 %v449, %v540
        %v557 = vmul.f32 %v490, %v541
        %v558 = vmul.f32 %v452, %v542
        %v559 = vmul.f32 %v493, %v543
        %v560 = vmul.f32 %v455, %v544
        %v561 = vmul.f32 %v496, %v545
        %v562 = vmul.f32 %v546, 0.16666667
        %v563 = vmul.f32 %v547, 0.16666667
        %v564 = vmul.f32 %v548, 0.16666667
        %v565 = vmul.f32 %v549, 0.16666667
        %v566 = vmul.f32 %v550, 0.16666667
        %v567 = vmul.f32 %v551, 0.16666667
        %v568 = vmul.f32 %v552, 0.16666667
        %v569 = vmul.f32 %v553, 0.16666667
        %v570 = vmul.f32 %v554, 0.16666667
        %v571 = vmul.f32 %v555, 0.16666667
        %v572 = vmul.f32 %v556, 0.16666667
        %v573 = vmul.f32 %v557, 0.16666667
        %v574 = vmul.f32 %v558, 0.16666667
        %v575 = vmul.f32 %v559, 0.16666667
        %v576 = vmul.f32 %v560, 0.16666667
        %v577 = vmul.f32 %v561, 0.16666667
        %v578 = vld [vmem:[%s2] sm:$0xff]
        %v579 = vld [vmem:[%s2 + $0x8] sm:$0xff]
        %v580 = vld [vmem:[%s2 + $0x10] sm:$0xff]
        %v581 = vld [vmem:[%s2 + $0x18] sm:$0xff]
        %v582 = vld [vmem:[%s2 + $0x20] sm:$0xff]
        %v583 = vld [vmem:[%s2 + $0x28] sm:$0xff]
        %v584 = vld [vmem:[%s2 + $0x30] sm:$0xff]
        %v585 = vld [vmem:[%s2 + $0x38] sm:$0xff]
        %v586 = vld [vmem:[%s8] sm:$0xff]
        %v587 = vld [vmem:[%s8 + $0x8] sm:$0xff]
        %v588 = vld [vmem:[%s8 + $0x10] sm:$0x1]
        %v589 = vld [vmem:[%s8 + $0x18] sm:$0x1]
        %598 = vrot.lane.b32.xlu0 %v563, 17
        %v599 = vpop.permute.xlu0 %598
        %600 = vrot.lane.b32.xlu0 %v565, 17
        %v601 = vpop.permute.xlu0 %600
        %602 = vrot.lane.b32.xlu0 %v567, 17
        %v603 = vpop.permute.xlu0 %602
        %604 = vrot.lane.b32.xlu0 %v569, 17
        %v605 = vpop.permute.xlu0 %604
        %606 = vrot.lane.b32.xlu0 %v571, 17
        %v607 = vpop.permute.xlu0 %606
        %608 = vrot.lane.b32.xlu0 %v573, 17
        %v609 = vpop.permute.xlu0 %608
        %610 = vrot.lane.b32.xlu0 %v575, 17
        %v611 = vpop.permute.xlu0 %610
        %612 = vrot.lane.b32.xlu0 %v577, 17
        %v613 = vpop.permute.xlu0 %612
        %630 = vrot.lane.b32.xlu0 %v562, 17
        %v631 = vpop.permute.xlu0 %630
        %632 = vrot.lane.b32.xlu0 %v564, 17
        %v633 = vpop.permute.xlu0 %632
        %634 = vrot.lane.b32.xlu0 %v566, 17
        %v635 = vpop.permute.xlu0 %634
        %636 = vrot.lane.b32.xlu0 %v568, 17
        %v637 = vpop.permute.xlu0 %636
        %638 = vrot.lane.b32.xlu0 %v570, 17
        %v639 = vpop.permute.xlu0 %638
        %640 = vrot.lane.b32.xlu0 %v572, 17
        %v641 = vpop.permute.xlu0 %640
        %642 = vrot.lane.b32.xlu0 %v574, 17
        %v643 = vpop.permute.xlu0 %642
        %644 = vrot.lane.b32.xlu0 %v576, 17
        %v645 = vpop.permute.xlu0 %644
        %vm646 = vcmask 138240
        %v647 = vsel %vm646, %v631, %v599
        %v648 = vsel %vm646, %v633, %v601
        %v649 = vsel %vm646, %v635, %v603
        %v650 = vsel %vm646, %v637, %v605
        %v651 = vsel %vm646, %v639, %v607
        %v652 = vsel %vm646, %v641, %v609
        %v653 = vsel %vm646, %v643, %v611
        %v654 = vsel %vm646, %v645, %v613
        %v671 = vsel %vm646, %v599, %v631
        %v672 = vsel %vm646, %v601, %v633
        %v673 = vsel %vm646, %v603, %v635
        %v674 = vsel %vm646, %v605, %v637
        %v675 = vsel %vm646, %v607, %v639
        %v676 = vsel %vm646, %v609, %v641
        %v677 = vsel %vm646, %v611, %v643
        %v678 = vsel %vm646, %v613, %v645
        %v679 = vperm.slane %v586, 0
        %v680 = vperm.slane %v587, 0
        %v681 = vmul.f32 %v671, %v679
        %v682 = vmul.f32 %v647, %v680
        %v683 = vmul.f32 %v672, %v679
        %v684 = vmul.f32 %v648, %v680
        %v685 = vmul.f32 %v673, %v679
        %v686 = vmul.f32 %v649, %v680
        %v687 = vmul.f32 %v674, %v679
        %v688 = vmul.f32 %v650, %v680
        %v689 = vmul.f32 %v675, %v679
        %v690 = vmul.f32 %v651, %v680
        %v691 = vmul.f32 %v676, %v679
        %v692 = vmul.f32 %v652, %v680
        %v693 = vmul.f32 %v677, %v679
        %v694 = vmul.f32 %v653, %v680
        %v695 = vmul.f32 %v678, %v679
        %v696 = vmul.f32 %v654, %v680
        %698 = vset.pattern.permute.xlu0 0
        %699 = vperm.xlu0 %698, %v578
        %v700 = vpop.permute.xlu0 %699
        %703 = vset.pattern.permute.xlu0 0
        %704 = vperm.xlu0 %703, %v579
        %v705 = vpop.permute.xlu0 %704
        %708 = vset.pattern.permute.xlu0 0
        %709 = vperm.xlu0 %708, %v580
        %v710 = vpop.permute.xlu0 %709
        %713 = vset.pattern.permute.xlu0 0
        %714 = vperm.xlu0 %713, %v581
        %v715 = vpop.permute.xlu0 %714
        %718 = vset.pattern.permute.xlu0 0
        %719 = vperm.xlu0 %718, %v582
        %v720 = vpop.permute.xlu0 %719
        %723 = vset.pattern.permute.xlu0 0
        %724 = vperm.xlu0 %723, %v583
        %v725 = vpop.permute.xlu0 %724
        %728 = vset.pattern.permute.xlu0 0
        %729 = vperm.xlu0 %728, %v584
        %v730 = vpop.permute.xlu0 %729
        %733 = vset.pattern.permute.xlu0 0
        %734 = vperm.xlu0 %733, %v585
        %v735 = vpop.permute.xlu0 %734
        %v737 = vmul.f32 %v681, %v700
        %v738 = vmul.f32 %v682, %v700
        %v739 = vmul.f32 %v683, %v705
        %v740 = vmul.f32 %v684, %v705
        %v741 = vmul.f32 %v685, %v710
        %v742 = vmul.f32 %v686, %v710
        %v743 = vmul.f32 %v687, %v715
        %v744 = vmul.f32 %v688, %v715
        %v745 = vmul.f32 %v689, %v720
        %v746 = vmul.f32 %v690, %v720
        %v747 = vmul.f32 %v691, %v725
        %v748 = vmul.f32 %v692, %v725
        %v749 = vmul.f32 %v693, %v730
        %v750 = vmul.f32 %v694, %v730
        %v751 = vmul.f32 %v695, %v735
        %v752 = vmul.f32 %v696, %v735
        %v753 = vadd.f32 %v737, 0.0
        %v754 = vadd.f32 %v738, 0.0
        %v755 = vadd.f32 %v739, 0.0
        %v756 = vadd.f32 %v740, 0.0
        %v757 = vadd.f32 %v741, 0.0
        %v758 = vadd.f32 %v742, 0.0
        %v759 = vadd.f32 %v743, 0.0
        %v760 = vadd.f32 %v744, 0.0
        %v761 = vadd.f32 %v745, 0.0
        %v762 = vadd.f32 %v746, 0.0
        %v763 = vadd.f32 %v747, 0.0
        %v764 = vadd.f32 %v748, 0.0
        %v765 = vadd.f32 %v749, 0.0
        %v766 = vadd.f32 %v750, 0.0
        %v767 = vadd.f32 %v751, 0.0
        %v768 = vadd.f32 %v752, 0.0
        %769 = vrot.lane.b32.xlu0 %v563, 16
        %v770 = vpop.permute.xlu0 %769
        %771 = vrot.lane.b32.xlu0 %v565, 16
        %v772 = vpop.permute.xlu0 %771
        %773 = vrot.lane.b32.xlu0 %v567, 16
        %v774 = vpop.permute.xlu0 %773
        %775 = vrot.lane.b32.xlu0 %v569, 16
        %v776 = vpop.permute.xlu0 %775
        %777 = vrot.lane.b32.xlu0 %v571, 16
        %v778 = vpop.permute.xlu0 %777
        %779 = vrot.lane.b32.xlu0 %v573, 16
        %v780 = vpop.permute.xlu0 %779
        %781 = vrot.lane.b32.xlu0 %v575, 16
        %v782 = vpop.permute.xlu0 %781
        %783 = vrot.lane.b32.xlu0 %v577, 16
        %v784 = vpop.permute.xlu0 %783
        %793 = vrot.lane.b32.xlu0 %v562, 16
        %v794 = vpop.permute.xlu0 %793
        %795 = vrot.lane.b32.xlu0 %v564, 16
        %v796 = vpop.permute.xlu0 %795
        %797 = vrot.lane.b32.xlu0 %v566, 16
        %v798 = vpop.permute.xlu0 %797
        %799 = vrot.lane.b32.xlu0 %v568, 16
        %v800 = vpop.permute.xlu0 %799
        %801 = vrot.lane.b32.xlu0 %v570, 16
        %v802 = vpop.permute.xlu0 %801
        %803 = vrot.lane.b32.xlu0 %v572, 16
        %v804 = vpop.permute.xlu0 %803
        %805 = vrot.lane.b32.xlu0 %v574, 16
        %v806 = vpop.permute.xlu0 %805
        %807 = vrot.lane.b32.xlu0 %v576, 16
        %v808 = vpop.permute.xlu0 %807
        %v809 = vsel %vm391, %v794, %v770
        %v810 = vsel %vm391, %v796, %v772
        %v811 = vsel %vm391, %v798, %v774
        %v812 = vsel %vm391, %v800, %v776
        %v813 = vsel %vm391, %v802, %v778
        %v814 = vsel %vm391, %v804, %v780
        %v815 = vsel %vm391, %v806, %v782
        %v816 = vsel %vm391, %v808, %v784
        %v833 = vsel %vm391, %v770, %v794
        %v834 = vsel %vm391, %v772, %v796
        %v835 = vsel %vm391, %v774, %v798
        %v836 = vsel %vm391, %v776, %v800
        %v837 = vsel %vm391, %v778, %v802
        %v838 = vsel %vm391, %v780, %v804
        %v839 = vsel %vm391, %v782, %v806
        %v840 = vsel %vm391, %v784, %v808
        %v841 = vperm.slane %v586, 1
        %v842 = vperm.slane %v587, 1
        %v843 = vmul.f32 %v833, %v841
        %v844 = vmul.f32 %v809, %v842
        %v845 = vmul.f32 %v834, %v841
        %v846 = vmul.f32 %v810, %v842
        %v847 = vmul.f32 %v835, %v841
        %v848 = vmul.f32 %v811, %v842
        %v849 = vmul.f32 %v836, %v841
        %v850 = vmul.f32 %v812, %v842
        %v851 = vmul.f32 %v837, %v841
        %v852 = vmul.f32 %v813, %v842
        %v853 = vmul.f32 %v838, %v841
        %v854 = vmul.f32 %v814, %v842
        %v855 = vmul.f32 %v839, %v841
        %v856 = vmul.f32 %v815, %v842
        %v857 = vmul.f32 %v840, %v841
        %v858 = vmul.f32 %v816, %v842
        %859 = vset.pattern.permute.xlu0 1
        %860 = vperm.xlu0 %859, %v578
        %v861 = vpop.permute.xlu0 %860
        %863 = vset.pattern.permute.xlu0 1
        %864 = vperm.xlu0 %863, %v579
        %v865 = vpop.permute.xlu0 %864
        %867 = vset.pattern.permute.xlu0 1
        %868 = vperm.xlu0 %867, %v580
        %v869 = vpop.permute.xlu0 %868
        %871 = vset.pattern.permute.xlu0 1
        %872 = vperm.xlu0 %871, %v581
        %v873 = vpop.permute.xlu0 %872
        %875 = vset.pattern.permute.xlu0 1
        %876 = vperm.xlu0 %875, %v582
        %v877 = vpop.permute.xlu0 %876
        %879 = vset.pattern.permute.xlu0 1
        %880 = vperm.xlu0 %879, %v583
        %v881 = vpop.permute.xlu0 %880
        %883 = vset.pattern.permute.xlu0 1
        %884 = vperm.xlu0 %883, %v584
        %v885 = vpop.permute.xlu0 %884
        %887 = vset.pattern.permute.xlu0 1
        %888 = vperm.xlu0 %887, %v585
        %v889 = vpop.permute.xlu0 %888
        %v891 = vmul.f32 %v843, %v861
        %v892 = vmul.f32 %v844, %v861
        %v893 = vmul.f32 %v845, %v865
        %v894 = vmul.f32 %v846, %v865
        %v895 = vmul.f32 %v847, %v869
        %v896 = vmul.f32 %v848, %v869
        %v897 = vmul.f32 %v849, %v873
        %v898 = vmul.f32 %v850, %v873
        %v899 = vmul.f32 %v851, %v877
        %v900 = vmul.f32 %v852, %v877
        %v901 = vmul.f32 %v853, %v881
        %v902 = vmul.f32 %v854, %v881
        %v903 = vmul.f32 %v855, %v885
        %v904 = vmul.f32 %v856, %v885
        %v905 = vmul.f32 %v857, %v889
        %v906 = vmul.f32 %v858, %v889
        %v907 = vadd.f32 %v753, %v891
        %v908 = vadd.f32 %v754, %v892
        %v909 = vadd.f32 %v755, %v893
        %v910 = vadd.f32 %v756, %v894
        %v911 = vadd.f32 %v757, %v895
        %v912 = vadd.f32 %v758, %v896
        %v913 = vadd.f32 %v759, %v897
        %v914 = vadd.f32 %v760, %v898
        %v915 = vadd.f32 %v761, %v899
        %v916 = vadd.f32 %v762, %v900
        %v917 = vadd.f32 %v763, %v901
        %v918 = vadd.f32 %v764, %v902
        %v919 = vadd.f32 %v765, %v903
        %v920 = vadd.f32 %v766, %v904
        %v921 = vadd.f32 %v767, %v905
        %v922 = vadd.f32 %v768, %v906
        %923 = vrot.lane.b32.xlu0 %v563, 15
        %v924 = vpop.permute.xlu0 %923
        %925 = vrot.lane.b32.xlu0 %v565, 15
        %v926 = vpop.permute.xlu0 %925
        %927 = vrot.lane.b32.xlu0 %v567, 15
        %v928 = vpop.permute.xlu0 %927
        %929 = vrot.lane.b32.xlu0 %v569, 15
        %v930 = vpop.permute.xlu0 %929
        %931 = vrot.lane.b32.xlu0 %v571, 15
        %v932 = vpop.permute.xlu0 %931
        %933 = vrot.lane.b32.xlu0 %v573, 15
        %v934 = vpop.permute.xlu0 %933
        %935 = vrot.lane.b32.xlu0 %v575, 15
        %v936 = vpop.permute.xlu0 %935
        %937 = vrot.lane.b32.xlu0 %v577, 15
        %v938 = vpop.permute.xlu0 %937
        %947 = vrot.lane.b32.xlu0 %v562, 15
        %v948 = vpop.permute.xlu0 %947
        %949 = vrot.lane.b32.xlu0 %v564, 15
        %v950 = vpop.permute.xlu0 %949
        %951 = vrot.lane.b32.xlu0 %v566, 15
        %v952 = vpop.permute.xlu0 %951
        %953 = vrot.lane.b32.xlu0 %v568, 15
        %v954 = vpop.permute.xlu0 %953
        %955 = vrot.lane.b32.xlu0 %v570, 15
        %v956 = vpop.permute.xlu0 %955
        %957 = vrot.lane.b32.xlu0 %v572, 15
        %v958 = vpop.permute.xlu0 %957
        %959 = vrot.lane.b32.xlu0 %v574, 15
        %v960 = vpop.permute.xlu0 %959
        %961 = vrot.lane.b32.xlu0 %v576, 15
        %v962 = vpop.permute.xlu0 %961
        %vm963 = vcmask 121856
        %v964 = vsel %vm963, %v948, %v924
        %v965 = vsel %vm963, %v950, %v926
        %v966 = vsel %vm963, %v952, %v928
        %v967 = vsel %vm963, %v954, %v930
        %v968 = vsel %vm963, %v956, %v932
        %v969 = vsel %vm963, %v958, %v934
        %v970 = vsel %vm963, %v960, %v936
        %v971 = vsel %vm963, %v962, %v938
        %v988 = vsel %vm963, %v924, %v948
        %v989 = vsel %vm963, %v926, %v950
        %v990 = vsel %vm963, %v928, %v952
        %v991 = vsel %vm963, %v930, %v954
        %v992 = vsel %vm963, %v932, %v956
        %v993 = vsel %vm963, %v934, %v958
        %v994 = vsel %vm963, %v936, %v960
        %v995 = vsel %vm963, %v938, %v962
        %v996 = vperm.slane %v586, 2
        %v997 = vperm.slane %v587, 2
        %v998 = vmul.f32 %v988, %v996
        %v999 = vmul.f32 %v964, %v997
        %v1000 = vmul.f32 %v989, %v996
        %v1001 = vmul.f32 %v965, %v997
        %v1002 = vmul.f32 %v990, %v996
        %v1003 = vmul.f32 %v966, %v997
        %v1004 = vmul.f32 %v991, %v996
        %v1005 = vmul.f32 %v967, %v997
        %v1006 = vmul.f32 %v992, %v996
        %v1007 = vmul.f32 %v968, %v997
        %v1008 = vmul.f32 %v993, %v996
        %v1009 = vmul.f32 %v969, %v997
        %v1010 = vmul.f32 %v994, %v996
        %v1011 = vmul.f32 %v970, %v997
        %v1012 = vmul.f32 %v995, %v996
        %v1013 = vmul.f32 %v971, %v997
        %1014 = vset.pattern.permute.xlu0 2
        %1015 = vperm.xlu0 %1014, %v578
        %v1016 = vpop.permute.xlu0 %1015
        %1018 = vset.pattern.permute.xlu0 2
        %1019 = vperm.xlu0 %1018, %v579
        %v1020 = vpop.permute.xlu0 %1019
        %1022 = vset.pattern.permute.xlu0 2
        %1023 = vperm.xlu0 %1022, %v580
        %v1024 = vpop.permute.xlu0 %1023
        %1026 = vset.pattern.permute.xlu0 2
        %1027 = vperm.xlu0 %1026, %v581
        %v1028 = vpop.permute.xlu0 %1027
        %1030 = vset.pattern.permute.xlu0 2
        %1031 = vperm.xlu0 %1030, %v582
        %v1032 = vpop.permute.xlu0 %1031
        %1034 = vset.pattern.permute.xlu0 2
        %1035 = vperm.xlu0 %1034, %v583
        %v1036 = vpop.permute.xlu0 %1035
        %1038 = vset.pattern.permute.xlu0 2
        %1039 = vperm.xlu0 %1038, %v584
        %v1040 = vpop.permute.xlu0 %1039
        %1042 = vset.pattern.permute.xlu0 2
        %1043 = vperm.xlu0 %1042, %v585
        %v1044 = vpop.permute.xlu0 %1043
        %v1046 = vmul.f32 %v998, %v1016
        %v1047 = vmul.f32 %v999, %v1016
        %v1048 = vmul.f32 %v1000, %v1020
        %v1049 = vmul.f32 %v1001, %v1020
        %v1050 = vmul.f32 %v1002, %v1024
        %v1051 = vmul.f32 %v1003, %v1024
        %v1052 = vmul.f32 %v1004, %v1028
        %v1053 = vmul.f32 %v1005, %v1028
        %v1054 = vmul.f32 %v1006, %v1032
        %v1055 = vmul.f32 %v1007, %v1032
        %v1056 = vmul.f32 %v1008, %v1036
        %v1057 = vmul.f32 %v1009, %v1036
        %v1058 = vmul.f32 %v1010, %v1040
        %v1059 = vmul.f32 %v1011, %v1040
        %v1060 = vmul.f32 %v1012, %v1044
        %v1061 = vmul.f32 %v1013, %v1044
        %v1062 = vadd.f32 %v907, %v1046
        %v1063 = vadd.f32 %v908, %v1047
        %v1064 = vadd.f32 %v909, %v1048
        %v1065 = vadd.f32 %v910, %v1049
        %v1066 = vadd.f32 %v911, %v1050
        %v1067 = vadd.f32 %v912, %v1051
        %v1068 = vadd.f32 %v913, %v1052
        %v1069 = vadd.f32 %v914, %v1053
        %v1070 = vadd.f32 %v915, %v1054
        %v1071 = vadd.f32 %v916, %v1055
        %v1072 = vadd.f32 %v917, %v1056
        %v1073 = vadd.f32 %v918, %v1057
        %v1074 = vadd.f32 %v919, %v1058
        %v1075 = vadd.f32 %v920, %v1059
        %v1076 = vadd.f32 %v921, %v1060
        %v1077 = vadd.f32 %v922, %v1061
        %1078 = vrot.lane.b32.xlu0 %v563, 1
        %v1079 = vpop.permute.xlu0 %1078
        %1080 = vrot.lane.b32.xlu0 %v565, 1
        %v1081 = vpop.permute.xlu0 %1080
        %1082 = vrot.lane.b32.xlu0 %v567, 1
        %v1083 = vpop.permute.xlu0 %1082
        %1084 = vrot.lane.b32.xlu0 %v569, 1
        %v1085 = vpop.permute.xlu0 %1084
        %1086 = vrot.lane.b32.xlu0 %v571, 1
        %v1087 = vpop.permute.xlu0 %1086
        %1088 = vrot.lane.b32.xlu0 %v573, 1
        %v1089 = vpop.permute.xlu0 %1088
        %1090 = vrot.lane.b32.xlu0 %v575, 1
        %v1091 = vpop.permute.xlu0 %1090
        %1092 = vrot.lane.b32.xlu0 %v577, 1
        %v1093 = vpop.permute.xlu0 %1092
        %1102 = vrot.lane.b32.xlu0 %v562, 1
        %v1103 = vpop.permute.xlu0 %1102
        %1104 = vrot.lane.b32.xlu0 %v564, 1
        %v1105 = vpop.permute.xlu0 %1104
        %1106 = vrot.lane.b32.xlu0 %v566, 1
        %v1107 = vpop.permute.xlu0 %1106
        %1108 = vrot.lane.b32.xlu0 %v568, 1
        %v1109 = vpop.permute.xlu0 %1108
        %1110 = vrot.lane.b32.xlu0 %v570, 1
        %v1111 = vpop.permute.xlu0 %1110
        %1112 = vrot.lane.b32.xlu0 %v572, 1
        %v1113 = vpop.permute.xlu0 %1112
        %1114 = vrot.lane.b32.xlu0 %v574, 1
        %v1115 = vpop.permute.xlu0 %1114
        %1116 = vrot.lane.b32.xlu0 %v576, 1
        %v1117 = vpop.permute.xlu0 %1116
        %vm1118 = vcmask 7168
        %v1119 = vsel %vm1118, %v1103, %v1079
        %v1120 = vsel %vm1118, %v1105, %v1081
        %v1121 = vsel %vm1118, %v1107, %v1083
        %v1122 = vsel %vm1118, %v1109, %v1085
        %v1123 = vsel %vm1118, %v1111, %v1087
        %v1124 = vsel %vm1118, %v1113, %v1089
        %v1125 = vsel %vm1118, %v1115, %v1091
        %v1126 = vsel %vm1118, %v1117, %v1093
        %v1143 = vsel %vm1118, %v1079, %v1103
        %v1144 = vsel %vm1118, %v1081, %v1105
        %v1145 = vsel %vm1118, %v1083, %v1107
        %v1146 = vsel %vm1118, %v1085, %v1109
        %v1147 = vsel %vm1118, %v1087, %v1111
        %v1148 = vsel %vm1118, %v1089, %v1113
        %v1149 = vsel %vm1118, %v1091, %v1115
        %v1150 = vsel %vm1118, %v1093, %v1117
        %v1151 = vperm.slane %v586, 3
        %v1152 = vperm.slane %v587, 3
        %v1153 = vmul.f32 %v1143, %v1151
        %v1154 = vmul.f32 %v1119, %v1152
        %v1155 = vmul.f32 %v1144, %v1151
        %v1156 = vmul.f32 %v1120, %v1152
        %v1157 = vmul.f32 %v1145, %v1151
        %v1158 = vmul.f32 %v1121, %v1152
        %v1159 = vmul.f32 %v1146, %v1151
        %v1160 = vmul.f32 %v1122, %v1152
        %v1161 = vmul.f32 %v1147, %v1151
        %v1162 = vmul.f32 %v1123, %v1152
        %v1163 = vmul.f32 %v1148, %v1151
        %v1164 = vmul.f32 %v1124, %v1152
        %v1165 = vmul.f32 %v1149, %v1151
        %v1166 = vmul.f32 %v1125, %v1152
        %v1167 = vmul.f32 %v1150, %v1151
        %v1168 = vmul.f32 %v1126, %v1152
        %1169 = vset.pattern.permute.xlu0 3
        %1170 = vperm.xlu0 %1169, %v578
        %v1171 = vpop.permute.xlu0 %1170
        %1173 = vset.pattern.permute.xlu0 3
        %1174 = vperm.xlu0 %1173, %v579
        %v1175 = vpop.permute.xlu0 %1174
        %1177 = vset.pattern.permute.xlu0 3
        %1178 = vperm.xlu0 %1177, %v580
        %v1179 = vpop.permute.xlu0 %1178
        %1181 = vset.pattern.permute.xlu0 3
        %1182 = vperm.xlu0 %1181, %v581
        %v1183 = vpop.permute.xlu0 %1182
        %1185 = vset.pattern.permute.xlu0 3
        %1186 = vperm.xlu0 %1185, %v582
        %v1187 = vpop.permute.xlu0 %1186
        %1189 = vset.pattern.permute.xlu0 3
        %1190 = vperm.xlu0 %1189, %v583
        %v1191 = vpop.permute.xlu0 %1190
        %1193 = vset.pattern.permute.xlu0 3
        %1194 = vperm.xlu0 %1193, %v584
        %v1195 = vpop.permute.xlu0 %1194
        %1197 = vset.pattern.permute.xlu0 3
        %1198 = vperm.xlu0 %1197, %v585
        %v1199 = vpop.permute.xlu0 %1198
        %v1201 = vmul.f32 %v1153, %v1171
        %v1202 = vmul.f32 %v1154, %v1171
        %v1203 = vmul.f32 %v1155, %v1175
        %v1204 = vmul.f32 %v1156, %v1175
        %v1205 = vmul.f32 %v1157, %v1179
        %v1206 = vmul.f32 %v1158, %v1179
        %v1207 = vmul.f32 %v1159, %v1183
        %v1208 = vmul.f32 %v1160, %v1183
        %v1209 = vmul.f32 %v1161, %v1187
        %v1210 = vmul.f32 %v1162, %v1187
        %v1211 = vmul.f32 %v1163, %v1191
        %v1212 = vmul.f32 %v1164, %v1191
        %v1213 = vmul.f32 %v1165, %v1195
        %v1214 = vmul.f32 %v1166, %v1195
        %v1215 = vmul.f32 %v1167, %v1199
        %v1216 = vmul.f32 %v1168, %v1199
        %v1217 = vadd.f32 %v1062, %v1201
        %v1218 = vadd.f32 %v1063, %v1202
        %v1219 = vadd.f32 %v1064, %v1203
        %v1220 = vadd.f32 %v1065, %v1204
        %v1221 = vadd.f32 %v1066, %v1205
        %v1222 = vadd.f32 %v1067, %v1206
        %v1223 = vadd.f32 %v1068, %v1207
        %v1224 = vadd.f32 %v1069, %v1208
        %v1225 = vadd.f32 %v1070, %v1209
        %v1226 = vadd.f32 %v1071, %v1210
        %v1227 = vadd.f32 %v1072, %v1211
        %v1228 = vadd.f32 %v1073, %v1212
        %v1229 = vadd.f32 %v1074, %v1213
        %v1230 = vadd.f32 %v1075, %v1214
        %v1231 = vadd.f32 %v1076, %v1215
        %v1232 = vadd.f32 %v1077, %v1216
        %v1233 = vperm.slane %v586, 4
        %v1234 = vperm.slane %v587, 4
        %v1235 = vmul.f32 %v562, %v1233
        %v1236 = vmul.f32 %v563, %v1234
        %v1237 = vmul.f32 %v564, %v1233
        %v1238 = vmul.f32 %v565, %v1234
        %v1239 = vmul.f32 %v566, %v1233
        %v1240 = vmul.f32 %v567, %v1234
        %v1241 = vmul.f32 %v568, %v1233
        %v1242 = vmul.f32 %v569, %v1234
        %v1243 = vmul.f32 %v570, %v1233
        %v1244 = vmul.f32 %v571, %v1234
        %v1245 = vmul.f32 %v572, %v1233
        %v1246 = vmul.f32 %v573, %v1234
        %v1247 = vmul.f32 %v574, %v1233
        %v1248 = vmul.f32 %v575, %v1234
        %v1249 = vmul.f32 %v576, %v1233
        %v1250 = vmul.f32 %v577, %v1234
        %1251 = vset.pattern.permute.xlu0 4
        %1252 = vperm.xlu0 %1251, %v578
        %v1253 = vpop.permute.xlu0 %1252
        %1255 = vset.pattern.permute.xlu0 4
        %1256 = vperm.xlu0 %1255, %v579
        %v1257 = vpop.permute.xlu0 %1256
        %1259 = vset.pattern.permute.xlu0 4
        %1260 = vperm.xlu0 %1259, %v580
        %v1261 = vpop.permute.xlu0 %1260
        %1263 = vset.pattern.permute.xlu0 4
        %1264 = vperm.xlu0 %1263, %v581
        %v1265 = vpop.permute.xlu0 %1264
        %1267 = vset.pattern.permute.xlu0 4
        %1268 = vperm.xlu0 %1267, %v582
        %v1269 = vpop.permute.xlu0 %1268
        %1271 = vset.pattern.permute.xlu0 4
        %1272 = vperm.xlu0 %1271, %v583
        %v1273 = vpop.permute.xlu0 %1272
        %1275 = vset.pattern.permute.xlu0 4
        %1276 = vperm.xlu0 %1275, %v584
        %v1277 = vpop.permute.xlu0 %1276
        %1279 = vset.pattern.permute.xlu0 4
        %1280 = vperm.xlu0 %1279, %v585
        %v1281 = vpop.permute.xlu0 %1280
        %v1283 = vmul.f32 %v1235, %v1253
        %v1284 = vmul.f32 %v1236, %v1253
        %v1285 = vmul.f32 %v1237, %v1257
        %v1286 = vmul.f32 %v1238, %v1257
        %v1287 = vmul.f32 %v1239, %v1261
        %v1288 = vmul.f32 %v1240, %v1261
        %v1289 = vmul.f32 %v1241, %v1265
        %v1290 = vmul.f32 %v1242, %v1265
        %v1291 = vmul.f32 %v1243, %v1269
        %v1292 = vmul.f32 %v1244, %v1269
        %v1293 = vmul.f32 %v1245, %v1273
        %v1294 = vmul.f32 %v1246, %v1273
        %v1295 = vmul.f32 %v1247, %v1277
        %v1296 = vmul.f32 %v1248, %v1277
        %v1297 = vmul.f32 %v1249, %v1281
        %v1298 = vmul.f32 %v1250, %v1281
        %v1299 = vadd.f32 %v1217, %v1283
        %v1300 = vadd.f32 %v1218, %v1284
        %v1301 = vadd.f32 %v1219, %v1285
        %v1302 = vadd.f32 %v1220, %v1286
        %v1303 = vadd.f32 %v1221, %v1287
        %v1304 = vadd.f32 %v1222, %v1288
        %v1305 = vadd.f32 %v1223, %v1289
        %v1306 = vadd.f32 %v1224, %v1290
        %v1307 = vadd.f32 %v1225, %v1291
        %v1308 = vadd.f32 %v1226, %v1292
        %v1309 = vadd.f32 %v1227, %v1293
        %v1310 = vadd.f32 %v1228, %v1294
        %v1311 = vadd.f32 %v1229, %v1295
        %v1312 = vadd.f32 %v1230, %v1296
        %v1313 = vadd.f32 %v1231, %v1297
        %v1314 = vadd.f32 %v1232, %v1298
        %1315 = vrot.lane.b32.xlu0 %v562, 127
        %v1316 = vpop.permute.xlu0 %1315
        %1317 = vrot.lane.b32.xlu0 %v563, 127
        %v1318 = vpop.permute.xlu0 %1317
        %1319 = vrot.lane.b32.xlu0 %v564, 127
        %v1320 = vpop.permute.xlu0 %1319
        %1321 = vrot.lane.b32.xlu0 %v565, 127
        %v1322 = vpop.permute.xlu0 %1321
        %1323 = vrot.lane.b32.xlu0 %v566, 127
        %v1324 = vpop.permute.xlu0 %1323
        %1325 = vrot.lane.b32.xlu0 %v567, 127
        %v1326 = vpop.permute.xlu0 %1325
        %1327 = vrot.lane.b32.xlu0 %v568, 127
        %v1328 = vpop.permute.xlu0 %1327
        %1329 = vrot.lane.b32.xlu0 %v569, 127
        %v1330 = vpop.permute.xlu0 %1329
        %1331 = vrot.lane.b32.xlu0 %v570, 127
        %v1332 = vpop.permute.xlu0 %1331
        %1333 = vrot.lane.b32.xlu0 %v571, 127
        %v1334 = vpop.permute.xlu0 %1333
        %1335 = vrot.lane.b32.xlu0 %v572, 127
        %v1336 = vpop.permute.xlu0 %1335
        %1337 = vrot.lane.b32.xlu0 %v573, 127
        %v1338 = vpop.permute.xlu0 %1337
        %1339 = vrot.lane.b32.xlu0 %v574, 127
        %v1340 = vpop.permute.xlu0 %1339
        %1341 = vrot.lane.b32.xlu0 %v575, 127
        %v1342 = vpop.permute.xlu0 %1341
        %1343 = vrot.lane.b32.xlu0 %v576, 127
        %v1344 = vpop.permute.xlu0 %1343
        %1345 = vrot.lane.b32.xlu0 %v577, 127
        %v1346 = vpop.permute.xlu0 %1345
        %vm1347 = vcmask 1039360
        %v1348 = vsel %vm1347, %v1316, %v1318
        %v1349 = vsel %vm1347, %v1320, %v1322
        %v1350 = vsel %vm1347, %v1324, %v1326
        %v1351 = vsel %vm1347, %v1328, %v1330
        %v1352 = vsel %vm1347, %v1332, %v1334
        %v1353 = vsel %vm1347, %v1336, %v1338
        %v1354 = vsel %vm1347, %v1340, %v1342
        %v1355 = vsel %vm1347, %v1344, %v1346
        %v1380 = vsel %vm1347, %v1318, %v1316
        %v1381 = vsel %vm1347, %v1322, %v1320
        %v1382 = vsel %vm1347, %v1326, %v1324
        %v1383 = vsel %vm1347, %v1330, %v1328
        %v1384 = vsel %vm1347, %v1334, %v1332
        %v1385 = vsel %vm1347, %v1338, %v1336
        %v1386 = vsel %vm1347, %v1342, %v1340
        %v1387 = vsel %vm1347, %v1346, %v1344
        %v1388 = vperm.slane %v586, 5
        %v1389 = vperm.slane %v587, 5
        %v1390 = vmul.f32 %v1348, %v1388
        %v1391 = vmul.f32 %v1380, %v1389
        %v1392 = vmul.f32 %v1349, %v1388
        %v1393 = vmul.f32 %v1381, %v1389
        %v1394 = vmul.f32 %v1350, %v1388
        %v1395 = vmul.f32 %v1382, %v1389
        %v1396 = vmul.f32 %v1351, %v1388
        %v1397 = vmul.f32 %v1383, %v1389
        %v1398 = vmul.f32 %v1352, %v1388
        %v1399 = vmul.f32 %v1384, %v1389
        %v1400 = vmul.f32 %v1353, %v1388
        %v1401 = vmul.f32 %v1385, %v1389
        %v1402 = vmul.f32 %v1354, %v1388
        %v1403 = vmul.f32 %v1386, %v1389
        %v1404 = vmul.f32 %v1355, %v1388
        %v1405 = vmul.f32 %v1387, %v1389
        %1406 = vset.pattern.permute.xlu0 5
        %1407 = vperm.xlu0 %1406, %v578
        %v1408 = vpop.permute.xlu0 %1407
        %1410 = vset.pattern.permute.xlu0 5
        %1411 = vperm.xlu0 %1410, %v579
        %v1412 = vpop.permute.xlu0 %1411
        %1414 = vset.pattern.permute.xlu0 5
        %1415 = vperm.xlu0 %1414, %v580
        %v1416 = vpop.permute.xlu0 %1415
        %1418 = vset.pattern.permute.xlu0 5
        %1419 = vperm.xlu0 %1418, %v581
        %v1420 = vpop.permute.xlu0 %1419
        %1422 = vset.pattern.permute.xlu0 5
        %1423 = vperm.xlu0 %1422, %v582
        %v1424 = vpop.permute.xlu0 %1423
        %1426 = vset.pattern.permute.xlu0 5
        %1427 = vperm.xlu0 %1426, %v583
        %v1428 = vpop.permute.xlu0 %1427
        %1430 = vset.pattern.permute.xlu0 5
        %1431 = vperm.xlu0 %1430, %v584
        %v1432 = vpop.permute.xlu0 %1431
        %1434 = vset.pattern.permute.xlu0 5
        %1435 = vperm.xlu0 %1434, %v585
        %v1436 = vpop.permute.xlu0 %1435
        %v1438 = vmul.f32 %v1390, %v1408
        %v1439 = vmul.f32 %v1391, %v1408
        %v1440 = vmul.f32 %v1392, %v1412
        %v1441 = vmul.f32 %v1393, %v1412
        %v1442 = vmul.f32 %v1394, %v1416
        %v1443 = vmul.f32 %v1395, %v1416
        %v1444 = vmul.f32 %v1396, %v1420
        %v1445 = vmul.f32 %v1397, %v1420
        %v1446 = vmul.f32 %v1398, %v1424
        %v1447 = vmul.f32 %v1399, %v1424
        %v1448 = vmul.f32 %v1400, %v1428
        %v1449 = vmul.f32 %v1401, %v1428
        %v1450 = vmul.f32 %v1402, %v1432
        %v1451 = vmul.f32 %v1403, %v1432
        %v1452 = vmul.f32 %v1404, %v1436
        %v1453 = vmul.f32 %v1405, %v1436
        %v1454 = vadd.f32 %v1299, %v1438
        %v1455 = vadd.f32 %v1300, %v1439
        %v1456 = vadd.f32 %v1301, %v1440
        %v1457 = vadd.f32 %v1302, %v1441
        %v1458 = vadd.f32 %v1303, %v1442
        %v1459 = vadd.f32 %v1304, %v1443
        %v1460 = vadd.f32 %v1305, %v1444
        %v1461 = vadd.f32 %v1306, %v1445
        %v1462 = vadd.f32 %v1307, %v1446
        %v1463 = vadd.f32 %v1308, %v1447
        %v1464 = vadd.f32 %v1309, %v1448
        %v1465 = vadd.f32 %v1310, %v1449
        %v1466 = vadd.f32 %v1311, %v1450
        %v1467 = vadd.f32 %v1312, %v1451
        %v1468 = vadd.f32 %v1313, %v1452
        %v1469 = vadd.f32 %v1314, %v1453
        %1470 = vrot.lane.b32.xlu0 %v562, 113
        %v1471 = vpop.permute.xlu0 %1470
        %1472 = vrot.lane.b32.xlu0 %v563, 113
        %v1473 = vpop.permute.xlu0 %1472
        %1474 = vrot.lane.b32.xlu0 %v564, 113
        %v1475 = vpop.permute.xlu0 %1474
        %1476 = vrot.lane.b32.xlu0 %v565, 113
        %v1477 = vpop.permute.xlu0 %1476
        %1478 = vrot.lane.b32.xlu0 %v566, 113
        %v1479 = vpop.permute.xlu0 %1478
        %1480 = vrot.lane.b32.xlu0 %v567, 113
        %v1481 = vpop.permute.xlu0 %1480
        %1482 = vrot.lane.b32.xlu0 %v568, 113
        %v1483 = vpop.permute.xlu0 %1482
        %1484 = vrot.lane.b32.xlu0 %v569, 113
        %v1485 = vpop.permute.xlu0 %1484
        %1486 = vrot.lane.b32.xlu0 %v570, 113
        %v1487 = vpop.permute.xlu0 %1486
        %1488 = vrot.lane.b32.xlu0 %v571, 113
        %v1489 = vpop.permute.xlu0 %1488
        %1490 = vrot.lane.b32.xlu0 %v572, 113
        %v1491 = vpop.permute.xlu0 %1490
        %1492 = vrot.lane.b32.xlu0 %v573, 113
        %v1493 = vpop.permute.xlu0 %1492
        %1494 = vrot.lane.b32.xlu0 %v574, 113
        %v1495 = vpop.permute.xlu0 %1494
        %1496 = vrot.lane.b32.xlu0 %v575, 113
        %v1497 = vpop.permute.xlu0 %1496
        %1498 = vrot.lane.b32.xlu0 %v576, 113
        %v1499 = vpop.permute.xlu0 %1498
        %1500 = vrot.lane.b32.xlu0 %v577, 113
        %v1501 = vpop.permute.xlu0 %1500
        %vm1502 = vcmask 924672
        %v1503 = vsel %vm1502, %v1471, %v1473
        %v1504 = vsel %vm1502, %v1475, %v1477
        %v1505 = vsel %vm1502, %v1479, %v1481
        %v1506 = vsel %vm1502, %v1483, %v1485
        %v1507 = vsel %vm1502, %v1487, %v1489
        %v1508 = vsel %vm1502, %v1491, %v1493
        %v1509 = vsel %vm1502, %v1495, %v1497
        %v1510 = vsel %vm1502, %v1499, %v1501
        %v1535 = vsel %vm1502, %v1473, %v1471
        %v1536 = vsel %vm1502, %v1477, %v1475
        %v1537 = vsel %vm1502, %v1481, %v1479
        %v1538 = vsel %vm1502, %v1485, %v1483
        %v1539 = vsel %vm1502, %v1489, %v1487
        %v1540 = vsel %vm1502, %v1493, %v1491
        %v1541 = vsel %vm1502, %v1497, %v1495
        %v1542 = vsel %vm1502, %v1501, %v1499
        %v1543 = vperm.slane %v586, 6
        %v1544 = vperm.slane %v587, 6
        %v1545 = vmul.f32 %v1503, %v1543
        %v1546 = vmul.f32 %v1535, %v1544
        %v1547 = vmul.f32 %v1504, %v1543
        %v1548 = vmul.f32 %v1536, %v1544
        %v1549 = vmul.f32 %v1505, %v1543
        %v1550 = vmul.f32 %v1537, %v1544
        %v1551 = vmul.f32 %v1506, %v1543
        %v1552 = vmul.f32 %v1538, %v1544
        %v1553 = vmul.f32 %v1507, %v1543
        %v1554 = vmul.f32 %v1539, %v1544
        %v1555 = vmul.f32 %v1508, %v1543
        %v1556 = vmul.f32 %v1540, %v1544
        %v1557 = vmul.f32 %v1509, %v1543
        %v1558 = vmul.f32 %v1541, %v1544
        %v1559 = vmul.f32 %v1510, %v1543
        %v1560 = vmul.f32 %v1542, %v1544
        %1561 = vset.pattern.permute.xlu0 6
        %1562 = vperm.xlu0 %1561, %v578
        %v1563 = vpop.permute.xlu0 %1562
        %1565 = vset.pattern.permute.xlu0 6
        %1566 = vperm.xlu0 %1565, %v579
        %v1567 = vpop.permute.xlu0 %1566
        %1569 = vset.pattern.permute.xlu0 6
        %1570 = vperm.xlu0 %1569, %v580
        %v1571 = vpop.permute.xlu0 %1570
        %1573 = vset.pattern.permute.xlu0 6
        %1574 = vperm.xlu0 %1573, %v581
        %v1575 = vpop.permute.xlu0 %1574
        %1577 = vset.pattern.permute.xlu0 6
        %1578 = vperm.xlu0 %1577, %v582
        %v1579 = vpop.permute.xlu0 %1578
        %1581 = vset.pattern.permute.xlu0 6
        %1582 = vperm.xlu0 %1581, %v583
        %v1583 = vpop.permute.xlu0 %1582
        %1585 = vset.pattern.permute.xlu0 6
        %1586 = vperm.xlu0 %1585, %v584
        %v1587 = vpop.permute.xlu0 %1586
        %1589 = vset.pattern.permute.xlu0 6
        %1590 = vperm.xlu0 %1589, %v585
        %v1591 = vpop.permute.xlu0 %1590
        %v1593 = vmul.f32 %v1545, %v1563
        %v1594 = vmul.f32 %v1546, %v1563
        %v1595 = vmul.f32 %v1547, %v1567
        %v1596 = vmul.f32 %v1548, %v1567
        %v1597 = vmul.f32 %v1549, %v1571
        %v1598 = vmul.f32 %v1550, %v1571
        %v1599 = vmul.f32 %v1551, %v1575
        %v1600 = vmul.f32 %v1552, %v1575
        %v1601 = vmul.f32 %v1553, %v1579
        %v1602 = vmul.f32 %v1554, %v1579
        %v1603 = vmul.f32 %v1555, %v1583
        %v1604 = vmul.f32 %v1556, %v1583
        %v1605 = vmul.f32 %v1557, %v1587
        %v1606 = vmul.f32 %v1558, %v1587
        %v1607 = vmul.f32 %v1559, %v1591
        %v1608 = vmul.f32 %v1560, %v1591
        %v1609 = vadd.f32 %v1454, %v1593
        %v1610 = vadd.f32 %v1455, %v1594
        %v1611 = vadd.f32 %v1456, %v1595
        %v1612 = vadd.f32 %v1457, %v1596
        %v1613 = vadd.f32 %v1458, %v1597
        %v1614 = vadd.f32 %v1459, %v1598
        %v1615 = vadd.f32 %v1460, %v1599
        %v1616 = vadd.f32 %v1461, %v1600
        %v1617 = vadd.f32 %v1462, %v1601
        %v1618 = vadd.f32 %v1463, %v1602
        %v1619 = vadd.f32 %v1464, %v1603
        %v1620 = vadd.f32 %v1465, %v1604
        %v1621 = vadd.f32 %v1466, %v1605
        %v1622 = vadd.f32 %v1467, %v1606
        %v1623 = vadd.f32 %v1468, %v1607
        %v1624 = vadd.f32 %v1469, %v1608
        %1625 = vrot.lane.b32.xlu0 %v562, 112
        %v1626 = vpop.permute.xlu0 %1625
        %1627 = vrot.lane.b32.xlu0 %v563, 112
        %v1628 = vpop.permute.xlu0 %1627
        %1629 = vrot.lane.b32.xlu0 %v564, 112
        %v1630 = vpop.permute.xlu0 %1629
        %1631 = vrot.lane.b32.xlu0 %v565, 112
        %v1632 = vpop.permute.xlu0 %1631
        %1633 = vrot.lane.b32.xlu0 %v566, 112
        %v1634 = vpop.permute.xlu0 %1633
        %1635 = vrot.lane.b32.xlu0 %v567, 112
        %v1636 = vpop.permute.xlu0 %1635
        %1637 = vrot.lane.b32.xlu0 %v568, 112
        %v1638 = vpop.permute.xlu0 %1637
        %1639 = vrot.lane.b32.xlu0 %v569, 112
        %v1640 = vpop.permute.xlu0 %1639
        %1641 = vrot.lane.b32.xlu0 %v570, 112
        %v1642 = vpop.permute.xlu0 %1641
        %1643 = vrot.lane.b32.xlu0 %v571, 112
        %v1644 = vpop.permute.xlu0 %1643
        %1645 = vrot.lane.b32.xlu0 %v572, 112
        %v1646 = vpop.permute.xlu0 %1645
        %1647 = vrot.lane.b32.xlu0 %v573, 112
        %v1648 = vpop.permute.xlu0 %1647
        %1649 = vrot.lane.b32.xlu0 %v574, 112
        %v1650 = vpop.permute.xlu0 %1649
        %1651 = vrot.lane.b32.xlu0 %v575, 112
        %v1652 = vpop.permute.xlu0 %1651
        %1653 = vrot.lane.b32.xlu0 %v576, 112
        %v1654 = vpop.permute.xlu0 %1653
        %1655 = vrot.lane.b32.xlu0 %v577, 112
        %v1656 = vpop.permute.xlu0 %1655
        %vm1657 = vcmask 916480
        %v1658 = vsel %vm1657, %v1626, %v1628
        %v1659 = vsel %vm1657, %v1630, %v1632
        %v1660 = vsel %vm1657, %v1634, %v1636
        %v1661 = vsel %vm1657, %v1638, %v1640
        %v1662 = vsel %vm1657, %v1642, %v1644
        %v1663 = vsel %vm1657, %v1646, %v1648
        %v1664 = vsel %vm1657, %v1650, %v1652
        %v1665 = vsel %vm1657, %v1654, %v1656
        %v1690 = vsel %vm1657, %v1628, %v1626
        %v1691 = vsel %vm1657, %v1632, %v1630
        %v1692 = vsel %vm1657, %v1636, %v1634
        %v1693 = vsel %vm1657, %v1640, %v1638
        %v1694 = vsel %vm1657, %v1644, %v1642
        %v1695 = vsel %vm1657, %v1648, %v1646
        %v1696 = vsel %vm1657, %v1652, %v1650
        %v1697 = vsel %vm1657, %v1656, %v1654
        %v1698 = vperm.slane %v586, 7
        %v1699 = vperm.slane %v587, 7
        %v1700 = vmul.f32 %v1658, %v1698
        %v1701 = vmul.f32 %v1690, %v1699
        %v1702 = vmul.f32 %v1659, %v1698
        %v1703 = vmul.f32 %v1691, %v1699
        %v1704 = vmul.f32 %v1660, %v1698
        %v1705 = vmul.f32 %v1692, %v1699
        %v1706 = vmul.f32 %v1661, %v1698
        %v1707 = vmul.f32 %v1693, %v1699
        %v1708 = vmul.f32 %v1662, %v1698
        %v1709 = vmul.f32 %v1694, %v1699
        %v1710 = vmul.f32 %v1663, %v1698
        %v1711 = vmul.f32 %v1695, %v1699
        %v1712 = vmul.f32 %v1664, %v1698
        %v1713 = vmul.f32 %v1696, %v1699
        %v1714 = vmul.f32 %v1665, %v1698
        %v1715 = vmul.f32 %v1697, %v1699
        %1716 = vset.pattern.permute.xlu0 7
        %1717 = vperm.xlu0 %1716, %v578
        %v1718 = vpop.permute.xlu0 %1717
        %1720 = vset.pattern.permute.xlu0 7
        %1721 = vperm.xlu0 %1720, %v579
        %v1722 = vpop.permute.xlu0 %1721
        %1724 = vset.pattern.permute.xlu0 7
        %1725 = vperm.xlu0 %1724, %v580
        %v1726 = vpop.permute.xlu0 %1725
        %1728 = vset.pattern.permute.xlu0 7
        %1729 = vperm.xlu0 %1728, %v581
        %v1730 = vpop.permute.xlu0 %1729
        %1732 = vset.pattern.permute.xlu0 7
        %1733 = vperm.xlu0 %1732, %v582
        %v1734 = vpop.permute.xlu0 %1733
        %1736 = vset.pattern.permute.xlu0 7
        %1737 = vperm.xlu0 %1736, %v583
        %v1738 = vpop.permute.xlu0 %1737
        %1740 = vset.pattern.permute.xlu0 7
        %1741 = vperm.xlu0 %1740, %v584
        %v1742 = vpop.permute.xlu0 %1741
        %1744 = vset.pattern.permute.xlu0 7
        %1745 = vperm.xlu0 %1744, %v585
        %v1746 = vpop.permute.xlu0 %1745
        %v1748 = vmul.f32 %v1700, %v1718
        %v1749 = vmul.f32 %v1701, %v1718
        %v1750 = vmul.f32 %v1702, %v1722
        %v1751 = vmul.f32 %v1703, %v1722
        %v1752 = vmul.f32 %v1704, %v1726
        %v1753 = vmul.f32 %v1705, %v1726
        %v1754 = vmul.f32 %v1706, %v1730
        %v1755 = vmul.f32 %v1707, %v1730
        %v1756 = vmul.f32 %v1708, %v1734
        %v1757 = vmul.f32 %v1709, %v1734
        %v1758 = vmul.f32 %v1710, %v1738
        %v1759 = vmul.f32 %v1711, %v1738
        %v1760 = vmul.f32 %v1712, %v1742
        %v1761 = vmul.f32 %v1713, %v1742
        %v1762 = vmul.f32 %v1714, %v1746
        %v1763 = vmul.f32 %v1715, %v1746
        %v1764 = vadd.f32 %v1609, %v1748
        %v1765 = vadd.f32 %v1610, %v1749
        %v1766 = vadd.f32 %v1611, %v1750
        %v1767 = vadd.f32 %v1612, %v1751
        %v1768 = vadd.f32 %v1613, %v1752
        %v1769 = vadd.f32 %v1614, %v1753
        %v1770 = vadd.f32 %v1615, %v1754
        %v1771 = vadd.f32 %v1616, %v1755
        %v1772 = vadd.f32 %v1617, %v1756
        %v1773 = vadd.f32 %v1618, %v1757
        %v1774 = vadd.f32 %v1619, %v1758
        %v1775 = vadd.f32 %v1620, %v1759
        %v1776 = vadd.f32 %v1621, %v1760
        %v1777 = vadd.f32 %v1622, %v1761
        %v1778 = vadd.f32 %v1623, %v1762
        %v1779 = vadd.f32 %v1624, %v1763
        %1780 = vrot.lane.b32.xlu0 %v562, 111
        %v1781 = vpop.permute.xlu0 %1780
        %1782 = vrot.lane.b32.xlu0 %v563, 111
        %v1783 = vpop.permute.xlu0 %1782
        %1784 = vrot.lane.b32.xlu0 %v564, 111
        %v1785 = vpop.permute.xlu0 %1784
        %1786 = vrot.lane.b32.xlu0 %v565, 111
        %v1787 = vpop.permute.xlu0 %1786
        %1788 = vrot.lane.b32.xlu0 %v566, 111
        %v1789 = vpop.permute.xlu0 %1788
        %1790 = vrot.lane.b32.xlu0 %v567, 111
        %v1791 = vpop.permute.xlu0 %1790
        %1792 = vrot.lane.b32.xlu0 %v568, 111
        %v1793 = vpop.permute.xlu0 %1792
        %1794 = vrot.lane.b32.xlu0 %v569, 111
        %v1795 = vpop.permute.xlu0 %1794
        %1796 = vrot.lane.b32.xlu0 %v570, 111
        %v1797 = vpop.permute.xlu0 %1796
        %1798 = vrot.lane.b32.xlu0 %v571, 111
        %v1799 = vpop.permute.xlu0 %1798
        %1800 = vrot.lane.b32.xlu0 %v572, 111
        %v1801 = vpop.permute.xlu0 %1800
        %1802 = vrot.lane.b32.xlu0 %v573, 111
        %v1803 = vpop.permute.xlu0 %1802
        %1804 = vrot.lane.b32.xlu0 %v574, 111
        %v1805 = vpop.permute.xlu0 %1804
        %1806 = vrot.lane.b32.xlu0 %v575, 111
        %v1807 = vpop.permute.xlu0 %1806
        %1808 = vrot.lane.b32.xlu0 %v576, 111
        %v1809 = vpop.permute.xlu0 %1808
        %1810 = vrot.lane.b32.xlu0 %v577, 111
        %v1811 = vpop.permute.xlu0 %1810
        %vm1812 = vcmask 908288
        %v1813 = vsel %vm1812, %v1781, %v1783
        %v1814 = vsel %vm1812, %v1785, %v1787
        %v1815 = vsel %vm1812, %v1789, %v1791
        %v1816 = vsel %vm1812, %v1793, %v1795
        %v1817 = vsel %vm1812, %v1797, %v1799
        %v1818 = vsel %vm1812, %v1801, %v1803
        %v1819 = vsel %vm1812, %v1805, %v1807
        %v1820 = vsel %vm1812, %v1809, %v1811
        %v1845 = vsel %vm1812, %v1783, %v1781
        %v1846 = vsel %vm1812, %v1787, %v1785
        %v1847 = vsel %vm1812, %v1791, %v1789
        %v1848 = vsel %vm1812, %v1795, %v1793
        %v1849 = vsel %vm1812, %v1799, %v1797
        %v1850 = vsel %vm1812, %v1803, %v1801
        %v1851 = vsel %vm1812, %v1807, %v1805
        %v1852 = vsel %vm1812, %v1811, %v1809
        %v1853 = vperm.slane %v588, 0
        %v1854 = vperm.slane %v589, 0
        %v1855 = vmul.f32 %v1813, %v1853
        %v1856 = vmul.f32 %v1845, %v1854
        %v1857 = vmul.f32 %v1814, %v1853
        %v1858 = vmul.f32 %v1846, %v1854
        %v1859 = vmul.f32 %v1815, %v1853
        %v1860 = vmul.f32 %v1847, %v1854
        %v1861 = vmul.f32 %v1816, %v1853
        %v1862 = vmul.f32 %v1848, %v1854
        %v1863 = vmul.f32 %v1817, %v1853
        %v1864 = vmul.f32 %v1849, %v1854
        %v1865 = vmul.f32 %v1818, %v1853
        %v1866 = vmul.f32 %v1850, %v1854
        %v1867 = vmul.f32 %v1819, %v1853
        %v1868 = vmul.f32 %v1851, %v1854
        %v1869 = vmul.f32 %v1820, %v1853
        %v1870 = vmul.f32 %v1852, %v1854
        %1871 = vset.pattern.permute.xlu0 8
        %1872 = vperm.xlu0 %1871, %v578
        %v1873 = vpop.permute.xlu0 %1872
        %1875 = vset.pattern.permute.xlu0 8
        %1876 = vperm.xlu0 %1875, %v579
        %v1877 = vpop.permute.xlu0 %1876
        %1879 = vset.pattern.permute.xlu0 8
        %1880 = vperm.xlu0 %1879, %v580
        %v1881 = vpop.permute.xlu0 %1880
        %1883 = vset.pattern.permute.xlu0 8
        %1884 = vperm.xlu0 %1883, %v581
        %v1885 = vpop.permute.xlu0 %1884
        %1887 = vset.pattern.permute.xlu0 8
        %1888 = vperm.xlu0 %1887, %v582
        %v1889 = vpop.permute.xlu0 %1888
        %1891 = vset.pattern.permute.xlu0 8
        %1892 = vperm.xlu0 %1891, %v583
        %v1893 = vpop.permute.xlu0 %1892
        %1895 = vset.pattern.permute.xlu0 8
        %1896 = vperm.xlu0 %1895, %v584
        %v1897 = vpop.permute.xlu0 %1896
        %1899 = vset.pattern.permute.xlu0 8
        %1900 = vperm.xlu0 %1899, %v585
        %v1901 = vpop.permute.xlu0 %1900
        %v1903 = vmul.f32 %v1855, %v1873
        %v1904 = vmul.f32 %v1856, %v1873
        %v1905 = vmul.f32 %v1857, %v1877
        %v1906 = vmul.f32 %v1858, %v1877
        %v1907 = vmul.f32 %v1859, %v1881
        %v1908 = vmul.f32 %v1860, %v1881
        %v1909 = vmul.f32 %v1861, %v1885
        %v1910 = vmul.f32 %v1862, %v1885
        %v1911 = vmul.f32 %v1863, %v1889
        %v1912 = vmul.f32 %v1864, %v1889
        %v1913 = vmul.f32 %v1865, %v1893
        %v1914 = vmul.f32 %v1866, %v1893
        %v1915 = vmul.f32 %v1867, %v1897
        %v1916 = vmul.f32 %v1868, %v1897
        %v1917 = vmul.f32 %v1869, %v1901
        %v1918 = vmul.f32 %v1870, %v1901
        %v1919 = vadd.f32 %v1764, %v1903
        %v1920 = vadd.f32 %v1765, %v1904
        %v1921 = vadd.f32 %v1766, %v1905
        %v1922 = vadd.f32 %v1767, %v1906
        %v1923 = vadd.f32 %v1768, %v1907
        %v1924 = vadd.f32 %v1769, %v1908
        %v1925 = vadd.f32 %v1770, %v1909
        %v1926 = vadd.f32 %v1771, %v1910
        %v1927 = vadd.f32 %v1772, %v1911
        %v1928 = vadd.f32 %v1773, %v1912
        %v1929 = vadd.f32 %v1774, %v1913
        %v1930 = vadd.f32 %v1775, %v1914
        %v1931 = vadd.f32 %v1776, %v1915
        %v1932 = vadd.f32 %v1777, %v1916
        %v1933 = vadd.f32 %v1778, %v1917
        %v1934 = vadd.f32 %v1779, %v1918
        %1935 = vset.pattern.permute.xlu0 1
        %1936 = vperm.xlu0 %1935, %v335
        %v1937 = vpop.permute.xlu0 %1936
        %1939 = vset.pattern.permute.xlu0 1
        %1940 = vperm.xlu0 %1939, %v336
        %v1941 = vpop.permute.xlu0 %1940
        %1943 = vset.pattern.permute.xlu0 1
        %1944 = vperm.xlu0 %1943, %v337
        %v1945 = vpop.permute.xlu0 %1944
        %1947 = vset.pattern.permute.xlu0 1
        %1948 = vperm.xlu0 %1947, %v338
        %v1949 = vpop.permute.xlu0 %1948
        %1951 = vset.pattern.permute.xlu0 1
        %1952 = vperm.xlu0 %1951, %v339
        %v1953 = vpop.permute.xlu0 %1952
        %1955 = vset.pattern.permute.xlu0 1
        %1956 = vperm.xlu0 %1955, %v340
        %v1957 = vpop.permute.xlu0 %1956
        %1959 = vset.pattern.permute.xlu0 1
        %1960 = vperm.xlu0 %1959, %v341
        %v1961 = vpop.permute.xlu0 %1960
        %1963 = vset.pattern.permute.xlu0 1
        %1964 = vperm.xlu0 %1963, %v342
        %v1965 = vpop.permute.xlu0 %1964
        %v1967 = vadd.f32 %v1919, %v1937
        %v1968 = vadd.f32 %v1920, %v1937
        %v1969 = vadd.f32 %v1921, %v1941
        %v1970 = vadd.f32 %v1922, %v1941
        %v1971 = vadd.f32 %v1923, %v1945
        %v1972 = vadd.f32 %v1924, %v1945
        %v1973 = vadd.f32 %v1925, %v1949
        %v1974 = vadd.f32 %v1926, %v1949
        %v1975 = vadd.f32 %v1927, %v1953
        %v1976 = vadd.f32 %v1928, %v1953
        %v1977 = vadd.f32 %v1929, %v1957
        %v1978 = vadd.f32 %v1930, %v1957
        %v1979 = vadd.f32 %v1931, %v1961
        %v1980 = vadd.f32 %v1932, %v1961
        %v1981 = vadd.f32 %v1933, %v1965
        %v1982 = vadd.f32 %v1934, %v1965
        %v1983 = vadd.f32 %v1967, 3.0
        %v1984 = vadd.f32 %v1968, 3.0
        %v1985 = vadd.f32 %v1969, 3.0
        %v1986 = vadd.f32 %v1970, 3.0
        %v1987 = vadd.f32 %v1971, 3.0
        %v1988 = vadd.f32 %v1972, 3.0
        %v1989 = vadd.f32 %v1973, 3.0
        %v1990 = vadd.f32 %v1974, 3.0
        %v1991 = vadd.f32 %v1975, 3.0
        %v1992 = vadd.f32 %v1976, 3.0
        %v1993 = vadd.f32 %v1977, 3.0
        %v1994 = vadd.f32 %v1978, 3.0
        %v1995 = vadd.f32 %v1979, 3.0
        %v1996 = vadd.f32 %v1980, 3.0
        %v1997 = vadd.f32 %v1981, 3.0
        %v1998 = vadd.f32 %v1982, 3.0
        %v1999 = vmax.f32 %v1983, 0.0
        %v2000 = vmax.f32 %v1984, 0.0
        %v2001 = vmax.f32 %v1985, 0.0
        %v2002 = vmax.f32 %v1986, 0.0
        %v2003 = vmax.f32 %v1987, 0.0
        %v2004 = vmax.f32 %v1988, 0.0
        %v2005 = vmax.f32 %v1989, 0.0
        %v2006 = vmax.f32 %v1990, 0.0
        %v2007 = vmax.f32 %v1991, 0.0
        %v2008 = vmax.f32 %v1992, 0.0
        %v2009 = vmax.f32 %v1993, 0.0
        %v2010 = vmax.f32 %v1994, 0.0
        %v2011 = vmax.f32 %v1995, 0.0
        %v2012 = vmax.f32 %v1996, 0.0
        %v2013 = vmax.f32 %v1997, 0.0
        %v2014 = vmax.f32 %v1998, 0.0
        %v2015 = vmin.f32 %v1999, 6.0
        %v2016 = vmin.f32 %v2000, 6.0
        %v2017 = vmin.f32 %v2001, 6.0
        %v2018 = vmin.f32 %v2002, 6.0
        %v2019 = vmin.f32 %v2003, 6.0
        %v2020 = vmin.f32 %v2004, 6.0
        %v2021 = vmin.f32 %v2005, 6.0
        %v2022 = vmin.f32 %v2006, 6.0
        %v2023 = vmin.f32 %v2007, 6.0
        %v2024 = vmin.f32 %v2008, 6.0
        %v2025 = vmin.f32 %v2009, 6.0
        %v2026 = vmin.f32 %v2010, 6.0
        %v2027 = vmin.f32 %v2011, 6.0
        %v2028 = vmin.f32 %v2012, 6.0
        %v2029 = vmin.f32 %v2013, 6.0
        %v2030 = vmin.f32 %v2014, 6.0
        %v2031 = vmul.f32 %v1967, %v2015
        %v2032 = vmul.f32 %v1968, %v2016
        %v2033 = vmul.f32 %v1969, %v2017
        %v2034 = vmul.f32 %v1970, %v2018
        %v2035 = vmul.f32 %v1971, %v2019
        %v2036 = vmul.f32 %v1972, %v2020
        %v2037 = vmul.f32 %v1973, %v2021
        %v2038 = vmul.f32 %v1974, %v2022
        %v2039 = vmul.f32 %v1975, %v2023
        %v2040 = vmul.f32 %v1976, %v2024
        %v2041 = vmul.f32 %v1977, %v2025
        %v2042 = vmul.f32 %v1978, %v2026
        %v2043 = vmul.f32 %v1979, %v2027
        %v2044 = vmul.f32 %v1980, %v2028
        %v2045 = vmul.f32 %v1981, %v2029
        %v2046 = vmul.f32 %v1982, %v2030
        %v2047 = vmul.f32 %v2031, 0.16666667
        %v2048 = vmul.f32 %v2032, 0.16666667
        %v2049 = vmul.f32 %v2033, 0.16666667
        %v2050 = vmul.f32 %v2034, 0.16666667
        %v2051 = vmul.f32 %v2035, 0.16666667
        %v2052 = vmul.f32 %v2036, 0.16666667
        %v2053 = vmul.f32 %v2037, 0.16666667
        %v2054 = vmul.f32 %v2038, 0.16666667
        %v2055 = vmul.f32 %v2039, 0.16666667
        %v2056 = vmul.f32 %v2040, 0.16666667
        %v2057 = vmul.f32 %v2041, 0.16666667
        %v2058 = vmul.f32 %v2042, 0.16666667
        %v2059 = vmul.f32 %v2043, 0.16666667
        %v2060 = vmul.f32 %v2044, 0.16666667
        %v2061 = vmul.f32 %v2045, 0.16666667
        %v2062 = vmul.f32 %v2046, 0.16666667
        %v2063 = vadd.f32 %v2047, %v2048
        %2064 = vadd.xlane.f32.xlu0 %v2063
        %v2065 = vpop.xlane.xlu0 %2064
        %v2066 = vadd.f32 %v2049, %v2050
        %2067 = vadd.xlane.f32.xlu0 %v2066
        %v2068 = vpop.xlane.xlu0 %2067
        %v2069 = vadd.f32 %v2051, %v2052
        %2070 = vadd.xlane.f32.xlu0 %v2069
        %v2071 = vpop.xlane.xlu0 %2070
        %v2072 = vadd.f32 %v2053, %v2054
        %2073 = vadd.xlane.f32.xlu0 %v2072
        %v2074 = vpop.xlane.xlu0 %2073
        %v2075 = vadd.f32 %v2055, %v2056
        %2076 = vadd.xlane.f32.xlu0 %v2075
        %v2077 = vpop.xlane.xlu0 %2076
        %v2078 = vadd.f32 %v2057, %v2058
        %2079 = vadd.xlane.f32.xlu0 %v2078
        %v2080 = vpop.xlane.xlu0 %2079
        %v2081 = vadd.f32 %v2059, %v2060
        %2082 = vadd.xlane.f32.xlu0 %v2081
        %v2083 = vpop.xlane.xlu0 %2082
        %v2084 = vadd.f32 %v2061, %v2062
        %2085 = vadd.xlane.f32.xlu0 %v2084
        %v2086 = vpop.xlane.xlu0 %2085
        %v2087 = vrcp.pop 256.0
        %v2088 = vmul.f32 256.0, %v2087
        %v2089 = vsub.f32 1.0, %v2088
        %v2090 = vmul.f32 %v2087, %v2089
        %v2091 = vadd.f32 %v2087, %v2090
        %vm2092 = vweird.f32 %v2087
        %v2093 = vsel %vm2092, %v2087, %v2091
        %v2094 = vmul.f32 %v2065, %v2093
        %v2095 = vmul.f32 %v2068, %v2093
        %v2096 = vmul.f32 %v2071, %v2093
        %v2097 = vmul.f32 %v2074, %v2093
        %v2098 = vmul.f32 %v2077, %v2093
        %v2099 = vmul.f32 %v2080, %v2093
        %v2100 = vmul.f32 %v2083, %v2093
        %v2101 = vmul.f32 %v2086, %v2093
        %v2102 = vld [vmem:[%s3] sm:$0xff]
        %v2103 = vld [vmem:[%s3 + $0x8] sm:$0xff]
        %v2104 = vld [vmem:[%s3 + $0x10] sm:$0xff]
        %v2105 = vld [vmem:[%s3 + $0x18] sm:$0xff]
        %v2106 = vld [vmem:[%s3 + $0x20] sm:$0xff]
        %v2107 = vld [vmem:[%s3 + $0x28] sm:$0xff]
        %v2108 = vld [vmem:[%s3 + $0x30] sm:$0xff]
        %v2109 = vld [vmem:[%s3 + $0x38] sm:$0xff]
        %v2110 = vmul.f32 %v2102, %v2094
        %v2111 = vmul.f32 %v2103, %v2095
        %v2112 = vmul.f32 %v2104, %v2096
        %v2113 = vmul.f32 %v2105, %v2097
        %v2114 = vmul.f32 %v2106, %v2098
        %v2115 = vmul.f32 %v2107, %v2099
        %v2116 = vmul.f32 %v2108, %v2100
        %v2117 = vmul.f32 %v2109, %v2101
        %v2118 = vsel %vm391, %v2110, 0.0
        %v2119 = vsel %vm391, %v2111, 0.0
        %v2120 = vadd.f32 %v2118, %v2119
        %v2121 = vsel %vm391, %v2112, 0.0
        %v2122 = vadd.f32 %v2120, %v2121
        %v2123 = vsel %vm391, %v2113, 0.0
        %v2124 = vadd.f32 %v2122, %v2123
        %v2125 = vsel %vm391, %v2114, 0.0
        %v2126 = vadd.f32 %v2124, %v2125
        %v2127 = vsel %vm391, %v2115, 0.0
        %v2128 = vadd.f32 %v2126, %v2127
        %v2129 = vsel %vm391, %v2116, 0.0
        %v2130 = vadd.f32 %v2128, %v2129
        %v2131 = vsel %vm391, %v2117, 0.0
        %v2132 = vadd.f32 %v2130, %v2131
        %v2133 = vrot.slane %v2132, 4
        %v2134 = vadd.f32 %v2132, %v2133
        %v2135 = vrot.slane %v2134, 2
        %v2136 = vadd.f32 %v2134, %v2135
        %v2137 = vrot.slane %v2136, 1
        %v2138 = vadd.f32 %v2136, %v2137
        %v2139 = vld [vmem:[%s6] sm:$0x1]
        %v2140 = vadd.f32 %v2138, %v2139
        %v2141 = vmax.f32 %v2140, 0.0
        %v2142 = vld [vmem:[%s4] sm:$0xff]
        %v2143 = vld [vmem:[%s4 + $0x8] sm:$0xff]
        %v2144 = vld [vmem:[%s4 + $0x10] sm:$0xff]
        %v2145 = vld [vmem:[%s4 + $0x18] sm:$0xff]
        %v2146 = vld [vmem:[%s4 + $0x20] sm:$0xff]
        %v2147 = vld [vmem:[%s4 + $0x28] sm:$0xff]
        %v2148 = vld [vmem:[%s4 + $0x30] sm:$0xff]
        %v2149 = vld [vmem:[%s4 + $0x38] sm:$0xff]
        %v2150 = vperm.slane %v2141, 0
        %v2151 = vmul.f32 %v2142, %v2150
        %v2152 = vmul.f32 %v2143, %v2150
        %v2153 = vmul.f32 %v2144, %v2150
        %v2154 = vmul.f32 %v2145, %v2150
        %v2155 = vmul.f32 %v2146, %v2150
        %v2156 = vmul.f32 %v2147, %v2150
        %v2157 = vmul.f32 %v2148, %v2150
        %v2158 = vmul.f32 %v2149, %v2150
        %v2159 = vsel %vm391, %v2151, 0.0
        %2160 = vadd.xlane.f32.xlu0 %v2159
        %v2161 = vpop.xlane.xlu0 %2160
        %v2162 = vsel %vm391, %v2152, 0.0
        %2163 = vadd.xlane.f32.xlu0 %v2162
        %v2164 = vpop.xlane.xlu0 %2163
        %v2165 = vsel %vm391, %v2153, 0.0
        %2166 = vadd.xlane.f32.xlu0 %v2165
        %v2167 = vpop.xlane.xlu0 %2166
        %v2168 = vsel %vm391, %v2154, 0.0
        %2169 = vadd.xlane.f32.xlu0 %v2168
        %v2170 = vpop.xlane.xlu0 %2169
        %v2171 = vsel %vm391, %v2155, 0.0
        %2172 = vadd.xlane.f32.xlu0 %v2171
        %v2173 = vpop.xlane.xlu0 %2172
        %v2174 = vsel %vm391, %v2156, 0.0
        %2175 = vadd.xlane.f32.xlu0 %v2174
        %v2176 = vpop.xlane.xlu0 %2175
        %v2177 = vsel %vm391, %v2157, 0.0
        %2178 = vadd.xlane.f32.xlu0 %v2177
        %v2179 = vpop.xlane.xlu0 %2178
        %v2180 = vsel %vm391, %v2158, 0.0
        %2181 = vadd.xlane.f32.xlu0 %v2180
        %v2182 = vpop.xlane.xlu0 %2181
        %v2183 = vadd.f32 %v2161, %v335
        %v2184 = vadd.f32 %v2164, %v336
        %v2185 = vadd.f32 %v2167, %v337
        %v2186 = vadd.f32 %v2170, %v338
        %v2187 = vadd.f32 %v2173, %v339
        %v2188 = vadd.f32 %v2176, %v340
        %v2189 = vadd.f32 %v2179, %v341
        %v2190 = vadd.f32 %v2182, %v342
        %v2191 = vmul.f32 %v2183, 0.16666667
        %v2192 = vmul.f32 %v2184, 0.16666667
        %v2193 = vmul.f32 %v2185, 0.16666667
        %v2194 = vmul.f32 %v2186, 0.16666667
        %v2195 = vmul.f32 %v2187, 0.16666667
        %v2196 = vmul.f32 %v2188, 0.16666667
        %v2197 = vmul.f32 %v2189, 0.16666667
        %v2198 = vmul.f32 %v2190, 0.16666667
        %v2199 = vadd.f32 %v2191, 0.5
        %v2200 = vadd.f32 %v2192, 0.5
        %v2201 = vadd.f32 %v2193, 0.5
        %v2202 = vadd.f32 %v2194, 0.5
        %v2203 = vadd.f32 %v2195, 0.5
        %v2204 = vadd.f32 %v2196, 0.5
        %v2205 = vadd.f32 %v2197, 0.5
        %v2206 = vadd.f32 %v2198, 0.5
        %v2207 = vmax.f32 %v2199, 0.0
        %v2208 = vmax.f32 %v2200, 0.0
        %v2209 = vmax.f32 %v2201, 0.0
        %v2210 = vmax.f32 %v2202, 0.0
        %v2211 = vmax.f32 %v2203, 0.0
        %v2212 = vmax.f32 %v2204, 0.0
        %v2213 = vmax.f32 %v2205, 0.0
        %v2214 = vmax.f32 %v2206, 0.0
        %v2215 = vmin.f32 %v2207, 1.0
        %v2216 = vmin.f32 %v2208, 1.0
        %v2217 = vmin.f32 %v2209, 1.0
        %v2218 = vmin.f32 %v2210, 1.0
        %v2219 = vmin.f32 %v2211, 1.0
        %v2220 = vmin.f32 %v2212, 1.0
        %v2221 = vmin.f32 %v2213, 1.0
        %v2222 = vmin.f32 %v2214, 1.0
        %2224 = vset.pattern.permute.xlu0 2
        %2225 = vperm.xlu0 %2224, %v2215
        %v2226 = vpop.permute.xlu0 %2225
        %2229 = vset.pattern.permute.xlu0 2
        %2230 = vperm.xlu0 %2229, %v2216
        %v2231 = vpop.permute.xlu0 %2230
        %2234 = vset.pattern.permute.xlu0 2
        %2235 = vperm.xlu0 %2234, %v2217
        %v2236 = vpop.permute.xlu0 %2235
        %2239 = vset.pattern.permute.xlu0 2
        %2240 = vperm.xlu0 %2239, %v2218
        %v2241 = vpop.permute.xlu0 %2240
        %2244 = vset.pattern.permute.xlu0 2
        %2245 = vperm.xlu0 %2244, %v2219
        %v2246 = vpop.permute.xlu0 %2245
        %2249 = vset.pattern.permute.xlu0 2
        %2250 = vperm.xlu0 %2249, %v2220
        %v2251 = vpop.permute.xlu0 %2250
        %2254 = vset.pattern.permute.xlu0 2
        %2255 = vperm.xlu0 %2254, %v2221
        %v2256 = vpop.permute.xlu0 %2255
        %2259 = vset.pattern.permute.xlu0 2
        %2260 = vperm.xlu0 %2259, %v2222
        %v2261 = vpop.permute.xlu0 %2260
        %v2263 = vmul.f32 %v2047, %v2226
        %v2264 = vmul.f32 %v2048, %v2226
        %v2265 = vmul.f32 %v2049, %v2231
        %v2266 = vmul.f32 %v2050, %v2231
        %v2267 = vmul.f32 %v2051, %v2236
        %v2268 = vmul.f32 %v2052, %v2236
        %v2269 = vmul.f32 %v2053, %v2241
        %v2270 = vmul.f32 %v2054, %v2241
        %v2271 = vmul.f32 %v2055, %v2246
        %v2272 = vmul.f32 %v2056, %v2246
        %v2273 = vmul.f32 %v2057, %v2251
        %v2274 = vmul.f32 %v2058, %v2251
        %v2275 = vmul.f32 %v2059, %v2256
        %v2276 = vmul.f32 %v2060, %v2256
        %v2277 = vmul.f32 %v2061, %v2261
        %v2278 = vmul.f32 %v2062, %v2261
        %v2279 = vld [vmem:[%s5] sm:$0xff]
        %v2280 = vld [vmem:[%s5 + $0x8] sm:$0xff]
        %2281 = vset.pattern.permute.xlu0 3
        %2282 = vperm.xlu0 %2281, %v335
        %v2283 = vpop.permute.xlu0 %2282
        %2285 = vset.pattern.permute.xlu0 3
        %2286 = vperm.xlu0 %2285, %v336
        %v2287 = vpop.permute.xlu0 %2286
        %vm2289 = vcmask 523264
        %v2291 = vsel %vm2289, %v2279, 0
        %v2294 = vsel %vm2289, %v2280, 0
        %2296 = vmatpush.msra.mxu0 0.0
        %2297 = vmatpush.msra.mxu0 0.0
        %2298 = vmatpush.msra.mxu0 0.0
        %2299 = vmatpush.msra.mxu0 0.0
        %2300 = vmatpush.msra.mxu0 0.0
        %2301 = vmatpush.msra.mxu0 0.0
        %2302 = vmatpush.msra.mxu0 0.0
        %2303 = vmatpush.msra.mxu0 0.0
        %2304 = vmatpush.msra.mxu0 %v2277
        %2305 = vmatpush.msra.mxu0 %v2275
        %2306 = vmatpush.msra.mxu0 %v2273
        %2307 = vmatpush.msra.mxu0 %v2271
        %2308 = vmatpush.msra.mxu0 %v2269
        %2309 = vmatpush.msra.mxu0 %v2267
        %2310 = vmatpush.msra.mxu0 %v2265
        %2311 = vmatpush.msra.mxu0 %v2263
        %2312 = vmatmul.f32.gmra.mxu0 %v2291
        %v2313 = vpop.f32.mrf.mxu0
        %v2314 = vadd.f32 %v2283, %v2313
        %2315 = vmatmul.f32.gmra.mxu0 %v2294
        %v2316 = vpop.f32.mrf.mxu0
        %v2317 = vadd.f32 %v2287, %v2316
        %2318 = vdwg.mxu0
        %2319 = vmatpush.msra.mxu0 0.0
        %2320 = vmatpush.msra.mxu0 0.0
        %2321 = vmatpush.msra.mxu0 0.0
        %2322 = vmatpush.msra.mxu0 0.0
        %2323 = vmatpush.msra.mxu0 0.0
        %2324 = vmatpush.msra.mxu0 0.0
        %2325 = vmatpush.msra.mxu0 0.0
        %2326 = vmatpush.msra.mxu0 0.0
        %2327 = vmatpush.msra.mxu0 %v2278
        %2328 = vmatpush.msra.mxu0 %v2276
        %2329 = vmatpush.msra.mxu0 %v2274
        %2330 = vmatpush.msra.mxu0 %v2272
        %2331 = vmatpush.msra.mxu0 %v2270
        %2332 = vmatpush.msra.mxu0 %v2268
        %2333 = vmatpush.msra.mxu0 %v2266
        %2334 = vmatpush.msra.mxu0 %v2264
        %2335 = vmatmul.f32.gmra.mxu0 %v2291
        %v2336 = vpop.f32.mrf.mxu0
        %v2337 = vadd.f32 %v2283, %v2336
        %2338 = vmatmul.f32.gmra.mxu0 %v2294
        %v2339 = vpop.f32.mrf.mxu0
        %v2340 = vadd.f32 %v2287, %v2339
        %2341 = vdwg.mxu0
        %v2342 = vadd.f32 %v2314, %v331
        %v2343 = vadd.f32 %v2337, %v332
        %v2344 = vadd.f32 %v2317, %v333
        %v2345 = vadd.f32 %v2340, %v334
        %2346 = vst [vmem:[%s325] sm:$0xff] %v2342
        %2347 = vst [vmem:[%s325 + $0x8] sm:$0xff] %v2343
        %2348 = vst [vmem:[%s325 + $0x10] sm:$0xff] %v2344
        %2349 = vst [vmem:[%s325 + $0x18] sm:$0xff] %v2345
        %s2350 = sand.u32 %s225, 1
        %s2351 = scalar_lea.sflag [#allocation3], %s2350
        %s2352 = sand.u32 %s225, 1
        %s2353 = smul.addr %s2352, 32
        %s2354 = scalar_lea.vmem [#allocation2], %s2353
        // Predicated region
        $region57: #{tpu_custom_call.1} parent=55 // pred_check
          %p2355 = pneg %p235
        $region58: #{tpu_custom_call.1} parent=55 // pred_check_branch
          %2357 = sbr.rel (%p2355) target = $region60
        $region59: #{tpu_custom_call.1} parent=55 // pred_region
          %2359 = vsyncadd %s2351, 0
          %s2360 = smul.addr %s23, 4
          %s2361 = smul.addr %s2360, 8
          %s2362 = scalar_lea.hbm %s9, %s2361
          %s2363 = sshll.u32 %s2354, 4
          %s2364 = int_to_ptr.vmem [resolvable:$true] %s2363
          %s2365 = sshll.u32 %s2362, 4
          %s2366 = int_to_ptr.hbm [resolvable:$true] %s2365
          %2371 = dma.vmem_to_hbm [thread:$0]  %s2364, 512, %s2366, %s2351, 256, 256, 16
        $region60: #{tpu_custom_call.1} parent=55 // pred_fallthru
          _
      $region56: #{tpu_custom_call.1} parent=5 // pred_fallthru
        _
      %p2372 = scmp.le.s32.totalorder 2, %s18
      // Predicated region
      $region61: #{tpu_custom_call.1} parent=5 // pred_check
        %p2373 = pneg %p2372
      $region62: #{tpu_custom_call.1} parent=5 // pred_check_branch
        %2375 = sbr.rel (%p2373) target = $region64
      $region63: #{tpu_custom_call.1} parent=5 // pred_region
        %s2376 = ssub.s32 %s18, 2
        // Predicated region
        $region65: #{tpu_custom_call.1} parent=63 // pred_check
          %p2377 = pneg %p241
        $region66: #{tpu_custom_call.1} parent=63 // pred_check_branch
          %2379 = sbr.rel (%p2377) target = $region68
        $region67: #{tpu_custom_call.1} parent=63 // pred_region
          %s2380 = sand.u32 %s226, 1
          %s2381 = scalar_lea.sflag [#allocation3], %s2380
          %s2382 = sand.u32 %s226, 1
          %s2383 = smul.addr %s2382, 32
          %s2384 = scalar_lea.vmem [#allocation2], %s2383
          %2386 = dma.done %s2381, 512
        $region68: #{tpu_custom_call.1} parent=63 // pred_fallthru
          _
      $region64: #{tpu_custom_call.1} parent=5 // pred_fallthru
        _
    $region6: #{tpu_custom_call.1} parent=1 // loop_footer
      %s22 = sadd.s32 1, %s18
    $region7: #{tpu_custom_call.1} parent=1 // loop_footer_branch
      %17 = sbr.rel target = $region3
    $region8: #{tpu_custom_call.1} parent=1 // loop_exit
      _
    %2387 = vsyncpa [#allocation3], 1
    %s2388 = scalar_lea.sflag [#allocation3], 1
    %2389 = vsyncpa %s2388, 1

</llo_original>
